<compile_context>
chip_gen: v6e
topology: v6e:2x2x1
jax: 0.10.0
libtpu: 0.0.40
codegen_flags: <defaults>
</compile_context>

<pallas_src>
import jax
import jax.numpy as jnp
from jax import lax
from jax.experimental import pallas as pl
from jax.experimental.pallas import tpu as pltpu

BN_EPS = 1e-5
LEAKY_SLOPE = 0.2

# Conservative VMEM sizing: safe on v5e/v6e (128 MiB VMEM) and v7x (64 MiB per TC).
VMEM_LIMIT_BYTES = 48 * 1024 * 1024
TILE_BUDGET_BYTES = 16 * 1024 * 1024   # counted (double-buffered) tile bytes per step


def _conv_taps(xw_ref, w_ref, toh, ow):
    """Stride-2 4x4 conv of one tile as 4 stride-1 taps over a space-to-depth window.

    xw_ref : (toh+1, ow+1, 4*C_in) bf16  -- overlapping input window (s2d(2) view)
    w_ref  : (2, 2, 4*C_in, CPAD) bf16   -- per-tap weights
    Returns a flattened (toh*ow, CPAD) f32 accumulator (one long matmul per tap).
    """
    c4 = xw_ref.shape[-1]
    acc = None
    for i in range(2):                           # row tap
        rows = xw_ref[i:i + toh]                 # (toh, ow+1, c4)
        for j in range(2):                       # col tap
            lhs = rows[:, j:j + ow, :].reshape(toh * ow, c4)
            d = jnp.dot(lhs, w_ref[i, j], preferred_element_type=jnp.float32)
            acc = d if acc is None else acc + d
    return acc


def _conv_stats_kernel(xw_ref, w_ref, stats_ref):
    """Pass 1: per-tile channel (sum, sum-of-squares) of the pre-bias conv output."""
    toh = xw_ref.shape[0] - 1
    ow = xw_ref.shape[1] - 1
    acc = _conv_taps(xw_ref, w_ref, toh, ow)                 # (toh*ow, CPAD) f32
    s = jnp.sum(acc, axis=0, keepdims=True)
    ss = jnp.sum(acc * acc, axis=0, keepdims=True)
    stats_ref[...] = jnp.concatenate([s, ss], axis=0)        # (2, CPAD)


def _conv_bn_act_kernel(xw_ref, w_ref, scale_ref, shift_ref, o_ref):
    """Pass 2: recompute the conv tile, apply folded BN (one FMA) + LeakyReLU(0.2)."""
    toh, ow, cpad = o_ref.shape
    acc = _conv_taps(xw_ref, w_ref, toh, ow)                 # (toh*ow, cpad) f32
    z = acc * scale_ref[...] + shift_ref[...]
    z = jnp.where(z > 0, z, LEAKY_SLOPE * z)
    o_ref[...] = z.reshape(toh, ow, cpad)


def _tile_vmem_bytes(toh, ow, ws, c4, cpad):
    inp = 2 * (toh + 1) * ws * c4 * 2                        # bf16 window, double-buffered
    wgt = 2 * 4 * c4 * cpad * 2                              # bf16 tap weights, double-buffered
    out = 2 * toh * ow * cpad * 4                            # f32 output tile, double-buffered
    tmp = 2 * toh * ow * cpad * 4 + 2 * toh * ow * c4 * 2    # acc + lhs temporaries (rough)
    return inp + wgt + out + tmp


def _pick_toh(oh, ow, ws, c4, cpad, n_batch,
              budget=TILE_BUDGET_BYTES, min_steps=4):
    divisors = [t for t in range(1, oh + 1) if oh % t == 0]
    fits = [t for t in divisors
            if _tile_vmem_bytes(t, ow, ws, c4, cpad) <= budget] or [1]
    # Keep at least `min_steps` grid steps when possible (v7x: 2 TCs share the grid).
    preferred = [t for t in fits if n_batch * (oh // t) >= min_steps]
    return max(preferred) if preferred else max(fits)


def bottleneck_forward(x_nchw, weight, bias, gamma, beta):
    """Conv2d(k=4,s=2,p=1) + BatchNorm2d (batch stats) + LeakyReLU(0.2). NCHW in/out."""
    N, C_in, H, W = x_nchw.shape
    C_out, c_in_w, KH, KW = weight.shape
    assert (c_in_w, KH, KW) == (C_in, 4, 4)
    assert H % 2 == 0 and W % 2 == 0, "H, W must be even for k=4/s=2/p=1"

    OH, OW = H // 2, W // 2
    HS, WS = OH + 1, OW + 1            # space-to-depth grid of the padded input
    C4 = 4 * C_in
    CPAD = max(128, ((C_out + 127) // 128) * 128)
    M = N * OH * OW

    # ---- input: NCHW -> NHWC -> pad -> space-to-depth(2) (pure permutation), bf16 ----
    x_nhwc = jnp.transpose(x_nchw, (0, 2, 3, 1))
    xp = jnp.pad(x_nhwc, ((0, 0), (1, 1), (1, 1), (0, 0)))
    xs = xp.reshape(N, HS, 2, WS, 2, C_in).transpose(0, 1, 3, 2, 4, 5)
    xs = xs.reshape(N, HS, WS, C4).astype(jnp.bfloat16)

    TOH = _pick_toh(OH, OW, WS, C4, CPAD, N)
    n_t = OH // TOH
    grid = (N, n_t)

    # One overlapping (TOH+1)-row window per tile feeds both row taps (replaces the old
    # xs_lo / xs_hi near-full duplicates; only one boundary row per tile is duplicated).
    row_idx = (jnp.arange(n_t) * TOH)[:, None] + jnp.arange(TOH + 1)[None, :]
    xs_t = jnp.take(xs, row_idx.reshape(-1), axis=1)
    xs_t = xs_t.reshape(N, n_t, TOH + 1, WS, C4)

    # ---- weights: (co, c, kh, kw) -> taps (i, j, dr*2C + dc*C + c, co_padded), bf16 ---
    w6 = weight.reshape(C_out, C_in, 2, 2, 2, 2)             # (co, c, i, dr, j, dc)
    w2 = jnp.transpose(w6, (2, 4, 3, 5, 1, 0)).reshape(2, 2, C4, C_out)
    w_taps = jnp.pad(w2, ((0, 0), (0, 0), (0, 0), (0, CPAD - C_out))).astype(jnp.bfloat16)
    gamma_p = jnp.pad(gamma, (0, CPAD - C_out)).astype(jnp.float32)
    beta_p = jnp.pad(beta, (0, CPAD - C_out)).astype(jnp.float32)
    # NOTE: `bias` is intentionally unused in the kernels — with train-mode batch-norm it
    # cancels exactly (y - mean removes it), and dropping it improves stats numerics.
    del bias

    cparams = pltpu.CompilerParams(
        dimension_semantics=("parallel", "parallel"),
        vmem_limit_bytes=VMEM_LIMIT_BYTES,
    )
    flops_conv = 2 * M * (4 * C4) * CPAD
    in_bytes = xs_t.size * 2 + w_taps.size * 2
    cost_stats = pl.CostEstimate(
        flops=flops_conv, transcendentals=0,
        bytes_accessed=in_bytes + N * n_t * 2 * CPAD * 4)
    cost_conv = pl.CostEstimate(
        flops=flops_conv + 4 * M * CPAD, transcendentals=0,
        bytes_accessed=in_bytes + 2 * CPAD * 4 + M * CPAD * 4)

    # ---- pass 1: per-tile (sum, sumsq) of the pre-bias conv output --------------------
    stats = pl.pallas_call(
        _conv_stats_kernel,
        out_shape=jax.ShapeDtypeStruct((N, n_t, 2, CPAD), jnp.float32),
        grid=grid,
        in_specs=[
            pl.BlockSpec((None, None, TOH + 1, WS, C4), lambda n, t: (n, t, 0, 0, 0)),
            pl.BlockSpec((2, 2, C4, CPAD), lambda n, t: (0, 0, 0, 0)),
        ],
        out_specs=pl.BlockSpec((None, None, 2, CPAD), lambda n, t: (n, t, 0, 0)),
        compiler_params=cparams,
        cost_estimate=cost_stats,
    )(xs_t, w_taps)

    # ---- global batch-norm stats (tiny XLA reduction) and folded affine ---------------
    sums = jnp.sum(stats, axis=(0, 1))                       # (2, CPAD)
    mean_c = sums[0] / M
    var = jnp.maximum(sums[1] / M - mean_c * mean_c, 0.0)    # biased variance (train BN)
    inv = lax.rsqrt(var + BN_EPS)
    # Padded channels: zero weights -> var=0 -> inv ~ 1/sqrt(eps), but gamma_p/beta_p are
    # zero there so scale/shift are zero and the sliced output is unaffected (benign).
    scale = (gamma_p * inv).reshape(1, CPAD)
    shift = (beta_p - mean_c * gamma_p * inv).reshape(1, CPAD)

    # ---- pass 2: recompute conv tile + folded BN FMA + LeakyReLU -----------------------
    out_p = pl.pallas_call(
        _conv_bn_act_kernel,
        out_shape=jax.ShapeDtypeStruct((N, OH, OW, CPAD), jnp.float32),
        grid=grid,
        in_specs=[
            pl.BlockSpec((None, None, TOH + 1, WS, C4), lambda n, t: (n, t, 0, 0, 0)),
            pl.BlockSpec((2, 2, C4, CPAD), lambda n, t: (0, 0, 0, 0)),
            pl.BlockSpec((1, CPAD), lambda n, t: (0, 0)),
            pl.BlockSpec((1, CPAD), lambda n, t: (0, 0)),
        ],
        out_specs=pl.BlockSpec((None, TOH, OW, CPAD), lambda n, t: (n, t, 0, 0)),
        compiler_params=cparams,
        cost_estimate=cost_conv,
    )(xs_t, w_taps, scale, shift)

    out_nhwc = out_p[..., :C_out]
    # TODO(synk): keep NHWC output (or fuse this transpose into the consumer) to avoid an
    # extra HBM round-trip; NCHW is kept here only to match the PyTorch module interface.
    return jnp.transpose(out_nhwc, (0, 3, 1, 2))


def _reference(x, weight, bias, gamma, beta):
    """Pure-JAX reference with the same bf16-operand / f32-accumulate quantization."""
    y = lax.conv_general_dilated(
        x.astype(jnp.bfloat16), weight.astype(jnp.bfloat16),
        window_strides=(2, 2), padding=((1, 1), (1, 1)),
        dimension_numbers=("NCHW", "OIHW", "NCHW"),
        preferred_element_type=jnp.float32)
    y = y + bias[None, :, None, None]
    mean = jnp.mean(y, axis=(0, 2, 3), keepdims=True)
    var = jnp.mean((y - mean) ** 2, axis=(0, 2, 3), keepdims=True)
    z = gamma[None, :, None, None] * (y - mean) * lax.rsqrt(var + BN_EPS) \
        + beta[None, :, None, None]
    return jnp.where(z > 0, z, LEAKY_SLOPE * z)


if __name__ == "__main__":
    key = jax.random.PRNGKey(0)
    k_x, k_w, k_b = jax.random.split(key, 3)

    N, C_in, H, W = 2, 4, 16, 16
    C_out = 8
    KH = KW = 4

    x = jax.random.normal(k_x, (N, C_in, H, W), dtype=jnp.float32)

    # Deterministic synthetic parameters (Conv2d / BatchNorm2d shapes and init style).
    fan_in = C_in * KH * KW
    bound = 1.0 / (fan_in ** 0.5)
    weight = jax.random.uniform(k_w, (C_out, C_in, KH, KW), jnp.float32, -bound, bound)
    bias = jax.random.uniform(k_b, (C_out,), jnp.float32, -bound, bound)
    gamma = jnp.ones((C_out,), jnp.float32)   # BatchNorm2d weight init
    beta = jnp.zeros((C_out,), jnp.float32)   # BatchNorm2d bias init

    fwd = jax.jit(bottleneck_forward)
    out = fwd(x, weight, bias, gamma, beta)
    out = jax.block_until_ready(out)

    assert out.shape == (N, C_out, H // 2, W // 2), out.shape
    assert bool(jnp.all(jnp.isfinite(out)))

    ref = _reference(x, weight, bias, gamma, beta)
    err = float(jnp.max(jnp.abs(out - ref)))
    assert err < 2e-2, f"max abs err {err}"

    print("KERNEL_OK")
</pallas_src>

<mosaic_0001>
module attributes {stable_mosaic.version = 11 : i64} {
  func.func @_conv_bn_act_kernel(%arg0: i32, %arg1: i32, %arg2: memref<1x1x5x9x16xbf16, #tpu.memory_space<vmem>>, %arg3: memref<2x2x16x128xbf16, #tpu.memory_space<vmem>>, %arg4: memref<1x128xf32, #tpu.memory_space<vmem>>, %arg5: memref<1x128xf32, #tpu.memory_space<vmem>>, %arg6: memref<1x4x8x128xf32, #tpu.memory_space<vmem>>) attributes {dimension_semantics = [#tpu.dimension_semantics<parallel>, #tpu.dimension_semantics<parallel>], iteration_bounds = array<i64: 2, 2>, scalar_prefetch = 0 : i64, scratch_operands = 0 : i64, tpu.core_type = #tpu.core_type<tc>, window_params = [{transform_indices = @transform_0, window_bounds = array<i64: 1, 1, 5, 9, 16>}, {pipeline_mode = #tpu.pipeline_mode<synchronous>, transform_indices = @transform_1, window_bounds = array<i64: 2, 2, 16, 128>}, {pipeline_mode = #tpu.pipeline_mode<synchronous>, transform_indices = @transform_2, window_bounds = array<i64: 1, 128>}, {pipeline_mode = #tpu.pipeline_mode<synchronous>, transform_indices = @transform_3, window_bounds = array<i64: 1, 128>}, {transform_indices = @transform_4, window_bounds = array<i64: 1, 4, 8, 128>}]} {
    %c0 = arith.constant 0 : index
    %c0_0 = arith.constant 0 : index
    %c0_1 = arith.constant 0 : index
    %c0_2 = arith.constant 0 : index
    %c0_3 = arith.constant 0 : index
    %0 = vector.load %arg2[%c0, %c0_0, %c0_1, %c0_2, %c0_3] : memref<1x1x5x9x16xbf16, #tpu.memory_space<vmem>>, vector<1x1x4x9x16xbf16>
    %1 = vector.shape_cast %0 : vector<1x1x4x9x16xbf16> to vector<4x9x16xbf16>
    %2 = vector.extract_strided_slice %1 {offsets = [0, 0, 0], sizes = [4, 8, 16], strides = [1, 1, 1]} : vector<4x9x16xbf16> to vector<4x8x16xbf16>
    %3 = vector.shape_cast %2 : vector<4x8x16xbf16> to vector<32x16xbf16>
    %c0_4 = arith.constant 0 : index
    %c0_5 = arith.constant 0 : index
    %c0_6 = arith.constant 0 : index
    %c0_7 = arith.constant 0 : index
    %4 = vector.load %arg3[%c0_4, %c0_5, %c0_6, %c0_7] : memref<2x2x16x128xbf16, #tpu.memory_space<vmem>>, vector<1x1x16x128xbf16>
    %5 = vector.shape_cast %4 : vector<1x1x16x128xbf16> to vector<16x128xbf16>
    %cst = arith.constant dense<0.000000e+00> : vector<32x128xf32>
    %6 = tpu.matmul %3, %5, %cst {dimension_numbers = #tpu.dot_dimension_numbers<[1], [0], [0], [1], [0, 0, 1, 1], [], []>} : vector<32x16xbf16>, vector<16x128xbf16>, vector<32x128xf32> -> vector<32x128xf32>
    %7 = vector.extract_strided_slice %1 {offsets = [0, 1, 0], sizes = [4, 8, 16], strides = [1, 1, 1]} : vector<4x9x16xbf16> to vector<4x8x16xbf16>
    %8 = vector.shape_cast %7 : vector<4x8x16xbf16> to vector<32x16xbf16>
    %c0_8 = arith.constant 0 : index
    %c1 = arith.constant 1 : index
    %c0_9 = arith.constant 0 : index
    %c0_10 = arith.constant 0 : index
    %9 = vector.load %arg3[%c0_8, %c1, %c0_9, %c0_10] : memref<2x2x16x128xbf16, #tpu.memory_space<vmem>>, vector<1x1x16x128xbf16>
    %10 = vector.shape_cast %9 : vector<1x1x16x128xbf16> to vector<16x128xbf16>
    %cst_11 = arith.constant dense<0.000000e+00> : vector<32x128xf32>
    %11 = tpu.matmul %8, %10, %cst_11 {dimension_numbers = #tpu.dot_dimension_numbers<[1], [0], [0], [1], [0, 0, 1, 1], [], []>} : vector<32x16xbf16>, vector<16x128xbf16>, vector<32x128xf32> -> vector<32x128xf32>
    %12 = arith.addf %6, %11 : vector<32x128xf32>
    %c0_12 = arith.constant 0 : index
    %c0_13 = arith.constant 0 : index
    %c1_14 = arith.constant 1 : index
    %c0_15 = arith.constant 0 : index
    %c0_16 = arith.constant 0 : index
    %13 = vector.load %arg2[%c0_12, %c0_13, %c1_14, %c0_15, %c0_16] : memref<1x1x5x9x16xbf16, #tpu.memory_space<vmem>>, vector<1x1x4x9x16xbf16>
    %14 = vector.shape_cast %13 : vector<1x1x4x9x16xbf16> to vector<4x9x16xbf16>
    %15 = vector.extract_strided_slice %14 {offsets = [0, 0, 0], sizes = [4, 8, 16], strides = [1, 1, 1]} : vector<4x9x16xbf16> to vector<4x8x16xbf16>
    %16 = vector.shape_cast %15 : vector<4x8x16xbf16> to vector<32x16xbf16>
    %c1_17 = arith.constant 1 : index
    %c0_18 = arith.constant 0 : index
    %c0_19 = arith.constant 0 : index
    %c0_20 = arith.constant 0 : index
    %17 = vector.load %arg3[%c1_17, %c0_18, %c0_19, %c0_20] : memref<2x2x16x128xbf16, #tpu.memory_space<vmem>>, vector<1x1x16x128xbf16>
    %18 = vector.shape_cast %17 : vector<1x1x16x128xbf16> to vector<16x128xbf16>
    %cst_21 = arith.constant dense<0.000000e+00> : vector<32x128xf32>
    %19 = tpu.matmul %16, %18, %cst_21 {dimension_numbers = #tpu.dot_dimension_numbers<[1], [0], [0], [1], [0, 0, 1, 1], [], []>} : vector<32x16xbf16>, vector<16x128xbf16>, vector<32x128xf32> -> vector<32x128xf32>
    %20 = arith.addf %12, %19 : vector<32x128xf32>
    %21 = vector.extract_strided_slice %14 {offsets = [0, 1, 0], sizes = [4, 8, 16], strides = [1, 1, 1]} : vector<4x9x16xbf16> to vector<4x8x16xbf16>
    %22 = vector.shape_cast %21 : vector<4x8x16xbf16> to vector<32x16xbf16>
    %c1_22 = arith.constant 1 : index
    %c1_23 = arith.constant 1 : index
    %c0_24 = arith.constant 0 : index
    %c0_25 = arith.constant 0 : index
    %23 = vector.load %arg3[%c1_22, %c1_23, %c0_24, %c0_25] : memref<2x2x16x128xbf16, #tpu.memory_space<vmem>>, vector<1x1x16x128xbf16>
    %24 = vector.shape_cast %23 : vector<1x1x16x128xbf16> to vector<16x128xbf16>
    %cst_26 = arith.constant dense<0.000000e+00> : vector<32x128xf32>
    %25 = tpu.matmul %22, %24, %cst_26 {dimension_numbers = #tpu.dot_dimension_numbers<[1], [0], [0], [1], [0, 0, 1, 1], [], []>} : vector<32x16xbf16>, vector<16x128xbf16>, vector<32x128xf32> -> vector<32x128xf32>
    %26 = arith.addf %20, %25 : vector<32x128xf32>
    %c0_27 = arith.constant 0 : index
    %c0_28 = arith.constant 0 : index
    %27 = vector.load %arg4[%c0_27, %c0_28] : memref<1x128xf32, #tpu.memory_space<vmem>>, vector<1x128xf32>
    %28 = vector.broadcast %27 : vector<1x128xf32> to vector<32x128xf32>
    %29 = arith.mulf %26, %28 : vector<32x128xf32>
    %c0_29 = arith.constant 0 : index
    %c0_30 = arith.constant 0 : index
    %30 = vector.load %arg5[%c0_29, %c0_30] : memref<1x128xf32, #tpu.memory_space<vmem>>, vector<1x128xf32>
    %31 = vector.broadcast %30 : vector<1x128xf32> to vector<32x128xf32>
    %32 = arith.addf %29, %31 : vector<32x128xf32>
    %cst_31 = arith.constant 0.000000e+00 : f32
    %33 = vector.broadcast %cst_31 : f32 to vector<32x128xf32>
    %34 = arith.cmpf ogt, %32, %33 : vector<32x128xf32>
    %cst_32 = arith.constant 2.000000e-01 : f32
    %35 = vector.broadcast %cst_32 : f32 to vector<32x128xf32>
    %36 = arith.mulf %35, %32 : vector<32x128xf32>
    %37 = arith.select %34, %32, %36 : vector<32x128xi1>, vector<32x128xf32>
    %38 = vector.shape_cast %37 : vector<32x128xf32> to vector<4x8x128xf32>
    %c0_33 = arith.constant 0 : index
    %c0_34 = arith.constant 0 : index
    %c0_35 = arith.constant 0 : index
    %c0_36 = arith.constant 0 : index
    %39 = vector.load %arg6[%c0_33, %c0_34, %c0_35, %c0_36] : memref<1x4x8x128xf32, #tpu.memory_space<vmem>>, vector<1x4x8x128xf32>
    %40 = vector.shape_cast %39 : vector<1x4x8x128xf32> to vector<4x8x128xf32>
    %41 = vector.shape_cast %38 : vector<4x8x128xf32> to vector<1x4x8x128xf32>
    tpu.vector_store %arg6[%c0_33, %c0_34, %c0_35, %c0_36], %41 {strides = array<i32>} : memref<1x4x8x128xf32, #tpu.memory_space<vmem>>, vector<1x4x8x128xf32>,
    return
  }
  func.func @transform_0(%arg0: i32, %arg1: i32) -> (i32, i32, i32, i32, i32) {
    %c0_i32 = arith.constant 0 : i32
    %c0_i32_0 = arith.constant 0 : i32
    %c0_i32_1 = arith.constant 0 : i32
    %c0_i32_2 = arith.constant 0 : i32
    return %arg0, %arg1, %c0_i32, %c0_i32_0, %c0_i32_1 : i32, i32, i32, i32, i32
  }
  func.func @transform_1(%arg0: i32, %arg1: i32) -> (i32, i32, i32, i32) {
    %c0_i32 = arith.constant 0 : i32
    %c0_i32_0 = arith.constant 0 : i32
    %c0_i32_1 = arith.constant 0 : i32
    %c0_i32_2 = arith.constant 0 : i32
    %c0_i32_3 = arith.constant 0 : i32
    return %c0_i32, %c0_i32_0, %c0_i32_1, %c0_i32_2 : i32, i32, i32, i32
  }
  func.func @transform_2(%arg0: i32, %arg1: i32) -> (i32, i32) {
    %c0_i32 = arith.constant 0 : i32
    %c0_i32_0 = arith.constant 0 : i32
    %c0_i32_1 = arith.constant 0 : i32
    return %c0_i32, %c0_i32_0 : i32, i32
  }
  func.func @transform_3(%arg0: i32, %arg1: i32) -> (i32, i32) {
    %c0_i32 = arith.constant 0 : i32
    %c0_i32_0 = arith.constant 0 : i32
    %c0_i32_1 = arith.constant 0 : i32
    return %c0_i32, %c0_i32_0 : i32, i32
  }
  func.func @transform_4(%arg0: i32, %arg1: i32) -> (i32, i32, i32, i32) {
    %c0_i32 = arith.constant 0 : i32
    %c0_i32_0 = arith.constant 0 : i32
    %c0_i32_1 = arith.constant 0 : i32
    return %arg0, %arg1, %c0_i32, %c0_i32_0 : i32, i32, i32, i32
  }
}

module attributes {stable_mosaic.version = 11 : i64} {
  func.func @_conv_stats_kernel(%arg0: i32, %arg1: i32, %arg2: memref<1x1x5x9x16xbf16, #tpu.memory_space<vmem>>, %arg3: memref<2x2x16x128xbf16, #tpu.memory_space<vmem>>, %arg4: memref<1x1x2x128xf32, #tpu.memory_space<vmem>>) attributes {dimension_semantics = [#tpu.dimension_semantics<parallel>, #tpu.dimension_semantics<parallel>], iteration_bounds = array<i64: 2, 2>, scalar_prefetch = 0 : i64, scratch_operands = 0 : i64, tpu.core_type = #tpu.core_type<tc>, window_params = [{transform_indices = @transform_0, window_bounds = array<i64: 1, 1, 5, 9, 16>}, {pipeline_mode = #tpu.pipeline_mode<synchronous>, transform_indices = @transform_1, window_bounds = array<i64: 2, 2, 16, 128>}, {transform_indices = @transform_2, window_bounds = array<i64: 1, 1, 2, 128>}]} {
    %c0 = arith.constant 0 : index
    %c0_0 = arith.constant 0 : index
    %c0_1 = arith.constant 0 : index
    %c0_2 = arith.constant 0 : index
    %c0_3 = arith.constant 0 : index
    %0 = vector.load %arg2[%c0, %c0_0, %c0_1, %c0_2, %c0_3] : memref<1x1x5x9x16xbf16, #tpu.memory_space<vmem>>, vector<1x1x4x9x16xbf16>
    %1 = vector.shape_cast %0 : vector<1x1x4x9x16xbf16> to vector<4x9x16xbf16>
    %2 = vector.extract_strided_slice %1 {offsets = [0, 0, 0], sizes = [4, 8, 16], strides = [1, 1, 1]} : vector<4x9x16xbf16> to vector<4x8x16xbf16>
    %3 = vector.shape_cast %2 : vector<4x8x16xbf16> to vector<32x16xbf16>
    %c0_4 = arith.constant 0 : index
    %c0_5 = arith.constant 0 : index
    %c0_6 = arith.constant 0 : index
    %c0_7 = arith.constant 0 : index
    %4 = vector.load %arg3[%c0_4, %c0_5, %c0_6, %c0_7] : memref<2x2x16x128xbf16, #tpu.memory_space<vmem>>, vector<1x1x16x128xbf16>
    %5 = vector.shape_cast %4 : vector<1x1x16x128xbf16> to vector<16x128xbf16>
    %cst = arith.constant dense<0.000000e+00> : vector<32x128xf32>
    %6 = tpu.matmul %3, %5, %cst {dimension_numbers = #tpu.dot_dimension_numbers<[1], [0], [0], [1], [0, 0, 1, 1], [], []>} : vector<32x16xbf16>, vector<16x128xbf16>, vector<32x128xf32> -> vector<32x128xf32>
    %7 = vector.extract_strided_slice %1 {offsets = [0, 1, 0], sizes = [4, 8, 16], strides = [1, 1, 1]} : vector<4x9x16xbf16> to vector<4x8x16xbf16>
    %8 = vector.shape_cast %7 : vector<4x8x16xbf16> to vector<32x16xbf16>
    %c0_8 = arith.constant 0 : index
    %c1 = arith.constant 1 : index
    %c0_9 = arith.constant 0 : index
    %c0_10 = arith.constant 0 : index
    %9 = vector.load %arg3[%c0_8, %c1, %c0_9, %c0_10] : memref<2x2x16x128xbf16, #tpu.memory_space<vmem>>, vector<1x1x16x128xbf16>
    %10 = vector.shape_cast %9 : vector<1x1x16x128xbf16> to vector<16x128xbf16>
    %cst_11 = arith.constant dense<0.000000e+00> : vector<32x128xf32>
    %11 = tpu.matmul %8, %10, %cst_11 {dimension_numbers = #tpu.dot_dimension_numbers<[1], [0], [0], [1], [0, 0, 1, 1], [], []>} : vector<32x16xbf16>, vector<16x128xbf16>, vector<32x128xf32> -> vector<32x128xf32>
    %12 = arith.addf %6, %11 : vector<32x128xf32>
    %c0_12 = arith.constant 0 : index
    %c0_13 = arith.constant 0 : index
    %c1_14 = arith.constant 1 : index
    %c0_15 = arith.constant 0 : index
    %c0_16 = arith.constant 0 : index
    %13 = vector.load %arg2[%c0_12, %c0_13, %c1_14, %c0_15, %c0_16] : memref<1x1x5x9x16xbf16, #tpu.memory_space<vmem>>, vector<1x1x4x9x16xbf16>
    %14 = vector.shape_cast %13 : vector<1x1x4x9x16xbf16> to vector<4x9x16xbf16>
    %15 = vector.extract_strided_slice %14 {offsets = [0, 0, 0], sizes = [4, 8, 16], strides = [1, 1, 1]} : vector<4x9x16xbf16> to vector<4x8x16xbf16>
    %16 = vector.shape_cast %15 : vector<4x8x16xbf16> to vector<32x16xbf16>
    %c1_17 = arith.constant 1 : index
    %c0_18 = arith.constant 0 : index
    %c0_19 = arith.constant 0 : index
    %c0_20 = arith.constant 0 : index
    %17 = vector.load %arg3[%c1_17, %c0_18, %c0_19, %c0_20] : memref<2x2x16x128xbf16, #tpu.memory_space<vmem>>, vector<1x1x16x128xbf16>
    %18 = vector.shape_cast %17 : vector<1x1x16x128xbf16> to vector<16x128xbf16>
    %cst_21 = arith.constant dense<0.000000e+00> : vector<32x128xf32>
    %19 = tpu.matmul %16, %18, %cst_21 {dimension_numbers = #tpu.dot_dimension_numbers<[1], [0], [0], [1], [0, 0, 1, 1], [], []>} : vector<32x16xbf16>, vector<16x128xbf16>, vector<32x128xf32> -> vector<32x128xf32>
    %20 = arith.addf %12, %19 : vector<32x128xf32>
    %21 = vector.extract_strided_slice %14 {offsets = [0, 1, 0], sizes = [4, 8, 16], strides = [1, 1, 1]} : vector<4x9x16xbf16> to vector<4x8x16xbf16>
    %22 = vector.shape_cast %21 : vector<4x8x16xbf16> to vector<32x16xbf16>
    %c1_22 = arith.constant 1 : index
    %c1_23 = arith.constant 1 : index
    %c0_24 = arith.constant 0 : index
    %c0_25 = arith.constant 0 : index
    %23 = vector.load %arg3[%c1_22, %c1_23, %c0_24, %c0_25] : memref<2x2x16x128xbf16, #tpu.memory_space<vmem>>, vector<1x1x16x128xbf16>
    %24 = vector.shape_cast %23 : vector<1x1x16x128xbf16> to vector<16x128xbf16>
    %cst_26 = arith.constant dense<0.000000e+00> : vector<32x128xf32>
    %25 = tpu.matmul %22, %24, %cst_26 {dimension_numbers = #tpu.dot_dimension_numbers<[1], [0], [0], [1], [0, 0, 1, 1], [], []>} : vector<32x16xbf16>, vector<16x128xbf16>, vector<32x128xf32> -> vector<32x128xf32>
    %26 = arith.addf %20, %25 : vector<32x128xf32>
    %cst_27 = arith.constant dense<0.000000e+00> : vector<128xf32>
    %27 = vector.multi_reduction <add>, %26, %cst_27 [0] : vector<32x128xf32> to vector<128xf32>
    %28 = vector.shape_cast %27 : vector<128xf32> to vector<1x128xf32>
    %29 = arith.mulf %26, %26 : vector<32x128xf32>
    %cst_28 = arith.constant dense<0.000000e+00> : vector<128xf32>
    %30 = vector.multi_reduction <add>, %29, %cst_28 [0] : vector<32x128xf32> to vector<128xf32>
    %31 = vector.shape_cast %30 : vector<128xf32> to vector<1x128xf32>
    %32 = tpu.concatenate %28, %31 in 0 : vector<1x128xf32>, vector<1x128xf32> -> vector<2x128xf32>
    %c0_29 = arith.constant 0 : index
    %c0_30 = arith.constant 0 : index
    %c0_31 = arith.constant 0 : index
    %c0_32 = arith.constant 0 : index
    %33 = vector.load %arg4[%c0_29, %c0_30, %c0_31, %c0_32] : memref<1x1x2x128xf32, #tpu.memory_space<vmem>>, vector<1x1x2x128xf32>
    %34 = vector.shape_cast %33 : vector<1x1x2x128xf32> to vector<2x128xf32>
    %35 = vector.shape_cast %32 : vector<2x128xf32> to vector<1x1x2x128xf32>
    tpu.vector_store %arg4[%c0_29, %c0_30, %c0_31, %c0_32], %35 {strides = array<i32>} : memref<1x1x2x128xf32, #tpu.memory_space<vmem>>, vector<1x1x2x128xf32>,
    return
  }
  func.func @transform_0(%arg0: i32, %arg1: i32) -> (i32, i32, i32, i32, i32) {
    %c0_i32 = arith.constant 0 : i32
    %c0_i32_0 = arith.constant 0 : i32
    %c0_i32_1 = arith.constant 0 : i32
    %c0_i32_2 = arith.constant 0 : i32
    return %arg0, %arg1, %c0_i32, %c0_i32_0, %c0_i32_1 : i32, i32, i32, i32, i32
  }
  func.func @transform_1(%arg0: i32, %arg1: i32) -> (i32, i32, i32, i32) {
    %c0_i32 = arith.constant 0 : i32
    %c0_i32_0 = arith.constant 0 : i32
    %c0_i32_1 = arith.constant 0 : i32
    %c0_i32_2 = arith.constant 0 : i32
    %c0_i32_3 = arith.constant 0 : i32
    return %c0_i32, %c0_i32_0, %c0_i32_1, %c0_i32_2 : i32, i32, i32, i32
  }
  func.func @transform_2(%arg0: i32, %arg1: i32) -> (i32, i32, i32, i32) {
    %c0_i32 = arith.constant 0 : i32
    %c0_i32_0 = arith.constant 0 : i32
    %c0_i32_1 = arith.constant 0 : i32
    return %arg0, %arg1, %c0_i32, %c0_i32_0 : i32, i32, i32, i32
  }
}

</mosaic_0001>

<llo_original>
// kernel: bottleneck_forward.2
$region0: #{bottleneck_forward.2}
  #allocation0 [shape = 'u32[]', space=smem, size = 0x4, offset = 0x4, fixed_abs, tag = 'smem constant byte address 0x4 - core index']
  #allocation1 [shape = 'u32[144,128]{1,0:T(1,128)}', space=vmem, size = 0x12000, scoped, tag = 'internal scratch']
  %s0 = inlined_call_operand.vmem [shape: bf16[2,2,5,9,16], index: 0, kind: input, shape index: {}]
  %s1 = inlined_call_operand.vmem [shape: bf16[2,2,16,128], index: 1, kind: input, shape index: {}]
  %s2 = inlined_call_operand.vmem [shape: f32[2,2,2,128], index: 2, kind: output, shape index: {}]
  %s3 = sld [smem:[#allocation0]]
  $region41: #{bottleneck_forward.2} parent=0
    _
  %s5 = ssub.s32 1, %s3
  %s6 = scalar_select 0, %s5, %s3
  loop: start=0, step=1, limit=6
  $region2: #{bottleneck_forward.2} parent=0 // loop_pre_header
    _
  $region3: #{bottleneck_forward.2} parent=0 // loop_header
    %s8 = sphi 0, %s12
    %p9 = scmp.ge.s32.totalorder %s8, 6
    %s15 = sphi 0, %s27
    %s16 = sphi 0, %s23
    %s17 = sphi 0, %s15
    %s18 = sphi 0, %s16
    %s19 = sphi 0, %s17
    %s20 = sphi 0, %s18
    %s32 = sphi 0, %s34
    %s35 = sphi 0, %s32
    %s36 = sphi 0, %s35
    %s52 = sphi 0, %s36
    %s56 = sphi 0, %s56
    %s58 = sphi 0, %s56
    %s59 = sphi 0, %s58
    %s73 = sphi 0, %s59
    %s81 = sphi 0, %s83
    %s84 = sphi 0, %s81
    %s85 = sphi 0, %s84
    %s101 = sphi 0, %s85
  $region4: #{bottleneck_forward.2} parent=0 // loop_header_branch
    %11 = sbr.rel (%p9) target = $region8
  $region5: #{bottleneck_forward.2} parent=0 // loop_body
    %s13 = ssub.s32 %s8, 1
    %s14 = ssub.s32 %s8, 2
    %s21 = sadd.s32 1, %s16
    %p22 = scmp.ge.s32.totalorder %s21, 2
    %s23 = scalar_select %p22, 0, %s21
    %s24 = sadd.s32 1, %s15
    %s25 = scalar_select %p22, %s24, %s15
    %p26 = scmp.ge.s32.totalorder %s25, 2
    %s27 = scalar_select %p26, 0, %s25
    %s28 = ssub.s32 %s15, %s27
    %s29 = ssub.s32 %s16, %s23
    %s30 = sor.u32 %s28, %s29
    %p31 = scmp.eq.s32.totalorder %s30, 0
    %s33 = sadd.s32 %s32, 1
    %s34 = scalar_select %p31, %s32, %s33
    %p37 = pneg %p31
    %p38 = scmp.eq.s32.totalorder %s8, 3
    %p39 = por %p37, %p38
    %p40 = scmp.ne.s32.totalorder %s32, %s35
    %p41 = scmp.eq.s32.totalorder %s8, 0
    %p42 = por %p40, %p41
    %p43 = scmp.ne.s32.totalorder %s32, %s35
    %p44 = scmp.eq.s32.totalorder %s13, 3
    %p45 = por %p43, %p44
    %p46 = scmp.ne.s32.totalorder %s35, %s36
    %p47 = scmp.eq.s32.totalorder %s13, 0
    %p48 = por %p46, %p47
    %p49 = scmp.ne.s32.totalorder %s35, %s36
    %p50 = scmp.eq.s32.totalorder %s14, 3
    %p51 = por %p49, %p50
    %p53 = scmp.ne.s32.totalorder %s36, %s52
    %p54 = scmp.eq.s32.totalorder %s14, 0
    %p55 = por %p53, %p54
    %s57 = sadd.s32 %s56, 1
    %p60 = scmp.eq.s32.totalorder %s8, 3
    %p61 = scmp.ne.s32.totalorder %s56, %s58
    %p62 = scmp.eq.s32.totalorder %s8, 0
    %p63 = por %p61, %p62
    %p64 = scmp.ne.s32.totalorder %s56, %s58
    %p65 = scmp.eq.s32.totalorder %s13, 3
    %p66 = por %p64, %p65
    %p67 = scmp.ne.s32.totalorder %s58, %s59
    %p68 = scmp.eq.s32.totalorder %s13, 0
    %p69 = por %p67, %p68
    %p70 = scmp.ne.s32.totalorder %s58, %s59
    %p71 = scmp.eq.s32.totalorder %s14, 3
    %p72 = por %p70, %p71
    %p74 = scmp.ne.s32.totalorder %s59, %s73
    %p75 = scmp.eq.s32.totalorder %s14, 0
    %p76 = por %p74, %p75
    %s77 = ssub.s32 %s15, %s27
    %s78 = ssub.s32 %s16, %s23
    %s79 = sor.u32 %s77, %s78
    %p80 = scmp.eq.s32.totalorder %s79, 0
    %s82 = sadd.s32 %s81, 1
    %s83 = scalar_select %p80, %s81, %s82
    %p86 = pneg %p80
    %p87 = scmp.eq.s32.totalorder %s8, 3
    %p88 = por %p86, %p87
    %p89 = scmp.ne.s32.totalorder %s81, %s84
    %p90 = scmp.eq.s32.totalorder %s8, 0
    %p91 = por %p89, %p90
    %p92 = scmp.ne.s32.totalorder %s81, %s84
    %p93 = scmp.eq.s32.totalorder %s13, 3
    %p94 = por %p92, %p93
    %p95 = scmp.ne.s32.totalorder %s84, %s85
    %p96 = scmp.eq.s32.totalorder %s13, 0
    %p97 = por %p95, %p96
    %p98 = scmp.ne.s32.totalorder %s84, %s85
    %p99 = scmp.eq.s32.totalorder %s14, 3
    %p100 = por %p98, %p99
    %p102 = scmp.ne.s32.totalorder %s85, %s101
    %p103 = scmp.eq.s32.totalorder %s14, 0
    %p104 = por %p102, %p103
    %p105 = scmp.le.s32.totalorder 1, %s8
    %p106 = scmp.lt.s32.totalorder %s8, 5
    %p107 = pnand %p105, %p106
    %p108 = pneg %p107
    // Predicated region
    $region9: #{bottleneck_forward.2} parent=5 // pred_check
      _
    $region10: #{bottleneck_forward.2} parent=5 // pred_check_branch
      %110 = sbr.rel (%p107) target = $region12
    $region11: #{bottleneck_forward.2} parent=5 // pred_region
      %s111 = ssub.s32 %s8, 1
      // Predicated region
      $region13: #{bottleneck_forward.2} parent=11 // pred_check
        %p112 = pneg %p69
      $region14: #{bottleneck_forward.2} parent=11 // pred_check_branch
        %114 = sbr.rel (%p112) target = $region16
      $region15: #{bottleneck_forward.2} parent=11 // pred_region
        _
      $region16: #{bottleneck_forward.2} parent=11 // pred_fallthru
        _
    $region12: #{bottleneck_forward.2} parent=5 // pred_fallthru
      _
    %p115 = scmp.lt.s32.totalorder %s8, 4
    // Predicated region
    $region17: #{bottleneck_forward.2} parent=5 // pred_check
      %p116 = pneg %p115
    $region18: #{bottleneck_forward.2} parent=5 // pred_check_branch
      %118 = sbr.rel (%p116) target = $region20
    $region19: #{bottleneck_forward.2} parent=5 // pred_region
      // Predicated region
      $region21: #{bottleneck_forward.2} parent=19 // pred_check
        %p119 = pneg %p42
      $region22: #{bottleneck_forward.2} parent=19 // pred_check_branch
        %121 = sbr.rel (%p119) target = $region24
      $region23: #{bottleneck_forward.2} parent=19 // pred_region
        %p122 = scmp.lt.s32.totalorder %s15, 1
        %s123 = scalar_select %p122, %s15, 1
        %p124 = scmp.lt.s32.totalorder %s16, 1
        %s125 = scalar_select %p124, %s16, 1
        %s126 = smul.addr %s125, 10
        %s127 = smul.addr %s123, 20
        %s128 = sadd.s32 %s126, %s127
        %s129 = smul.addr %s128, 4
        %s130 = scalar_lea.vmem %s0, %s129
      $region24: #{bottleneck_forward.2} parent=19 // pred_fallthru
        _
    $region20: #{bottleneck_forward.2} parent=5 // pred_fallthru
      _
    %p131 = scmp.le.s32.totalorder 1, %s8
    %p132 = scmp.lt.s32.totalorder %s8, 5
    %p133 = pnand %p131, %p132
    %p134 = pneg %p133
    // Predicated region
    $region25: #{bottleneck_forward.2} parent=5 // pred_check
      _
    $region26: #{bottleneck_forward.2} parent=5 // pred_check_branch
      %136 = sbr.rel (%p133) target = $region28
    $region27: #{bottleneck_forward.2} parent=5 // pred_region
      %s137 = ssub.s32 %s8, 1
      %p138 = scmp.lt.s32.totalorder %s17, 1
      %s139 = scalar_select %p138, %s17, 1
      %p140 = scmp.lt.s32.totalorder %s18, 1
      %s141 = scalar_select %p140, %s18, 1
      %s142 = smul.addr %s141, 10
      %s143 = smul.addr %s139, 20
      %s144 = sadd.s32 %s142, %s143
      %s145 = smul.addr %s144, 4
      %s146 = scalar_lea.vmem %s0, %s145
      %p147 = pneg %p48
      %p148 = pneg %p45
      %p149 = pneg %p69
      %p150 = pneg %p66
      %p151 = pneg %p97
      %p152 = pneg %p94
      %p153 = scmp.lt.s32.totalorder %s17, 1
      %s154 = scalar_select %p153, %s17, 1
      %p155 = scmp.lt.s32.totalorder %s18, 1
      %s156 = scalar_select %p155, %s18, 1
      %s157 = smul.addr %s154, 2
      %s158 = sadd.s32 %s156, %s157
      %s159 = smul.addr %s158, 2
      %s160 = scalar_lea.vmem %s2, %s159
      %p161 = scmp.lt.s32.totalorder %s17, 1
      %s162 = scalar_select %p161, %s17, 1
      %p163 = scmp.lt.s32.totalorder %s18, 1
      %s164 = scalar_select %p163, %s18, 1
      %s165 = smul.addr %s164, 10
      %s166 = smul.addr %s162, 20
      %s167 = sadd.s32 %s165, %s166
      %s168 = smul.addr %s167, 4
      %s169 = scalar_lea.vmem %s0, %s168
      %p170 = scmp.lt.s32.totalorder %s17, 1
      %s171 = scalar_select %p170, %s17, 1
      %p172 = scmp.lt.s32.totalorder %s18, 1
      %s173 = scalar_select %p172, %s18, 1
      %s174 = smul.addr %s171, 2
      %s175 = sadd.s32 %s173, %s174
      %s176 = smul.addr %s175, 2
      %s177 = scalar_lea.vmem %s2, %s176
      %v179 = vld [vmem:[%s169] sm:$0xf]
      %v180 = vld [vmem:[%s169 + $0x4] sm:$0x1]
      %v181 = vld [vmem:[%s169 + $0x8] sm:$0xf]
      %v182 = vld [vmem:[%s169 + $0xc] sm:$0x1]
      %v183 = vld [vmem:[%s169 + $0x10] sm:$0xf]
      %v184 = vld [vmem:[%s169 + $0x14] sm:$0x1]
      %v185 = vld [vmem:[%s169 + $0x18] sm:$0xf]
      %v186 = vld [vmem:[%s169 + $0x1c] sm:$0x1]
      %v187 = vld [vmem:[%s1] sm:$0xf]
      %v188 = vld [vmem:[%s1 + $0x4] sm:$0xf]
      %vm189 = vsmask.f32 3328
      %vm190 = vsmask.f32 7440
      %vm191 = vmor %vm189, %vm190
      %v193 = vshrl.u32 %v179, 16
      %v195 = vrot.slane %v193, 4
      %v196 = vshll.u32 %v179, 16
      %v198 = vrot.slane %v196, 5
      %v199 = vor.u32 %v195, %v198
      %v200 = vrot.slane %v199, 4
      %v202 = vshll.u32 %v180, 16
      %v204 = vrot.slane %v202, 5
      %v205 = vsel %vm191, %v200, %v204
      %v207 = vshrl.u32 %v181, 16
      %v209 = vrot.slane %v207, 4
      %v210 = vshll.u32 %v181, 16
      %v212 = vrot.slane %v210, 5
      %v213 = vor.u32 %v209, %v212
      %v214 = vrot.slane %v213, 4
      %v216 = vshll.u32 %v182, 16
      %v218 = vrot.slane %v216, 5
      %v219 = vsel %vm191, %v214, %v218
      %v221 = vshrl.u32 %v183, 16
      %v223 = vrot.slane %v221, 4
      %v224 = vshll.u32 %v183, 16
      %v226 = vrot.slane %v224, 5
      %v227 = vor.u32 %v223, %v226
      %v228 = vrot.slane %v227, 4
      %v230 = vshll.u32 %v184, 16
      %v232 = vrot.slane %v230, 5
      %v233 = vsel %vm191, %v228, %v232
      %v235 = vshrl.u32 %v185, 16
      %v237 = vrot.slane %v235, 4
      %v238 = vshll.u32 %v185, 16
      %v240 = vrot.slane %v238, 5
      %v241 = vor.u32 %v237, %v240
      %v242 = vrot.slane %v241, 4
      %v244 = vshll.u32 %v186, 16
      %v246 = vrot.slane %v244, 5
      %v247 = vsel %vm191, %v242, %v246
      %s248 = scalar_lea.vmem %s1, 8
      %v249 = vld [vmem:[%s248] sm:$0xf]
      %v250 = vld [vmem:[%s248 + $0x4] sm:$0xf]
      %v251 = vunpack.c.l.b16 %v205
      %v252 = vunpack.c.l.b16 %v219
      %v253 = vunpack.c.l.b16 %v233
      %v254 = vunpack.c.l.b16 %v247
      %v255 = vpack.c.b16 %v252, %v251
      %v256 = vpack.c.b16 %v254, %v253
      %v259 = vunpack.c.l.b16 %v249
      %v260 = vunpack.c.l.b16 %v250
      %v261 = vpack.c.b16 %v260, %v259
      %vm263 = vcmask 130048
      %v265 = vsel %vm263, %v255, 0
      %v268 = vsel %vm263, %v256, 0
      %270 = vmatprep.subr.bf16.mxu0 0
      %271 = vmatpush1.bf16.msra.mxu0 0
      %272 = vmatprep.subr.bf16.mxu0 0
      %273 = vmatpush1.bf16.msra.mxu0 0
      %274 = vmatprep.subr.bf16.mxu0 0
      %275 = vmatpush1.bf16.msra.mxu0 0
      %276 = vmatprep.subr.bf16.mxu0 0
      %277 = vmatpush1.bf16.msra.mxu0 0
      %278 = vmatprep.subr.bf16.mxu0 0
      %279 = vmatpush1.bf16.msra.mxu0 0
      %280 = vmatprep.subr.bf16.mxu0 0
      %281 = vmatpush1.bf16.msra.mxu0 0
      %282 = vmatprep.subr.bf16.mxu0 0
      %283 = vmatpush1.bf16.msra.mxu0 0
      %284 = vmatprep.subr.bf16.mxu0 0
      %285 = vmatpush1.bf16.msra.mxu0 %v261
      %286 = vmatprep.subr.bf16.mxu0 0
      %287 = vmatpush2.bf16.msra.mxu0 0
      %288 = vmatprep.subr.bf16.mxu0 0
      %289 = vmatpush2.bf16.msra.mxu0 0
      %290 = vmatprep.subr.bf16.mxu0 0
      %291 = vmatpush2.bf16.msra.mxu0 0
      %292 = vmatprep.subr.bf16.mxu0 0
      %293 = vmatpush2.bf16.msra.mxu0 0
      %294 = vmatprep.subr.bf16.mxu0 0
      %295 = vmatpush2.bf16.msra.mxu0 0
      %296 = vmatprep.subr.bf16.mxu0 0
      %297 = vmatpush2.bf16.msra.mxu0 0
      %298 = vmatprep.subr.bf16.mxu0 0
      %299 = vmatpush2.bf16.msra.mxu0 0
      %300 = vmatprep.subr.bf16.mxu0 0
      %301 = vmatpush2.bf16.msra.mxu0 0
      %302 = vmatprep.mubr.bf16.mxu0 0
      %303 = vmatmul.mubr.bf16.gmra.mxu0 %v265
      %v304 = vpop.f32.mrf.mxu0
      %v305 = vadd.f32 0.0, %v304
      %v306 = vpop.f32.mrf.mxu0
      %v307 = vpop.f32.mrf.mxu0
      %v308 = vadd.f32 0.0, %v307
      %v309 = vpop.f32.mrf.mxu0
      %310 = vmatprep.mubr.bf16.mxu0 0
      %311 = vmatmul.mubr.bf16.gmra.mxu0 %v268
      %v312 = vpop.f32.mrf.mxu0
      %v313 = vadd.f32 0.0, %v312
      %v314 = vpop.f32.mrf.mxu0
      %v315 = vpop.f32.mrf.mxu0
      %v316 = vadd.f32 0.0, %v315
      %v317 = vpop.f32.mrf.mxu0
      %318 = vdwg.mxu0
      %v323 = vunpack.c.l.b16 %v179
      %v324 = vunpack.c.l.b16 %v181
      %v325 = vunpack.c.l.b16 %v183
      %v326 = vunpack.c.l.b16 %v185
      %v327 = vpack.c.b16 %v324, %v323
      %v328 = vpack.c.b16 %v326, %v325
      %v331 = vunpack.c.l.b16 %v187
      %v332 = vunpack.c.l.b16 %v188
      %v333 = vpack.c.b16 %v332, %v331
      %v336 = vsel %vm263, %v327, 0
      %v339 = vsel %vm263, %v328, 0
      %341 = vmatprep.subr.bf16.mxu0 0
      %342 = vmatpush1.bf16.msra.mxu0 0
      %343 = vmatprep.subr.bf16.mxu0 0
      %344 = vmatpush1.bf16.msra.mxu0 0
      %345 = vmatprep.subr.bf16.mxu0 0
      %346 = vmatpush1.bf16.msra.mxu0 0
      %347 = vmatprep.subr.bf16.mxu0 0
      %348 = vmatpush1.bf16.msra.mxu0 0
      %349 = vmatprep.subr.bf16.mxu0 0
      %350 = vmatpush1.bf16.msra.mxu0 0
      %351 = vmatprep.subr.bf16.mxu0 0
      %352 = vmatpush1.bf16.msra.mxu0 0
      %353 = vmatprep.subr.bf16.mxu0 0
      %354 = vmatpush1.bf16.msra.mxu0 0
      %355 = vmatprep.subr.bf16.mxu0 0
      %356 = vmatpush1.bf16.msra.mxu0 %v333
      %357 = vmatprep.subr.bf16.mxu0 0
      %358 = vmatpush2.bf16.msra.mxu0 0
      %359 = vmatprep.subr.bf16.mxu0 0
      %360 = vmatpush2.bf16.msra.mxu0 0
      %361 = vmatprep.subr.bf16.mxu0 0
      %362 = vmatpush2.bf16.msra.mxu0 0
      %363 = vmatprep.subr.bf16.mxu0 0
      %364 = vmatpush2.bf16.msra.mxu0 0
      %365 = vmatprep.subr.bf16.mxu0 0
      %366 = vmatpush2.bf16.msra.mxu0 0
      %367 = vmatprep.subr.bf16.mxu0 0
      %368 = vmatpush2.bf16.msra.mxu0 0
      %369 = vmatprep.subr.bf16.mxu0 0
      %370 = vmatpush2.bf16.msra.mxu0 0
      %371 = vmatprep.subr.bf16.mxu0 0
      %372 = vmatpush2.bf16.msra.mxu0 0
      %373 = vmatprep.mubr.bf16.mxu0 0
      %374 = vmatmul.mubr.bf16.gmra.mxu0 %v336
      %v375 = vpop.f32.mrf.mxu0
      %v376 = vadd.f32 %v305, %v375
      %v377 = vpop.f32.mrf.mxu0
      %v378 = vpop.f32.mrf.mxu0
      %v379 = vadd.f32 %v308, %v378
      %v380 = vpop.f32.mrf.mxu0
      %381 = vmatprep.mubr.bf16.mxu0 0
      %382 = vmatmul.mubr.bf16.gmra.mxu0 %v339
      %v383 = vpop.f32.mrf.mxu0
      %v384 = vadd.f32 %v313, %v383
      %v385 = vpop.f32.mrf.mxu0
      %v386 = vpop.f32.mrf.mxu0
      %v387 = vadd.f32 %v316, %v386
      %v388 = vpop.f32.mrf.mxu0
      %389 = vdwg.mxu0
      %s390 = scalar_lea.vmem %s169, 8
      %v391 = vld [vmem:[%s390] sm:$0xf]
      %v392 = vld [vmem:[%s390 + $0x4] sm:$0x1]
      %v393 = vld [vmem:[%s390 + $0x8] sm:$0xf]
      %v394 = vld [vmem:[%s390 + $0xc] sm:$0x1]
      %v395 = vld [vmem:[%s390 + $0x10] sm:$0xf]
      %v396 = vld [vmem:[%s390 + $0x14] sm:$0x1]
      %v397 = vld [vmem:[%s390 + $0x18] sm:$0xf]
      %v398 = vld [vmem:[%s390 + $0x1c] sm:$0x1]
      %s399 = scalar_lea.vmem %s1, 16
      %v400 = vld [vmem:[%s399] sm:$0xf]
      %v401 = vld [vmem:[%s399 + $0x4] sm:$0xf]
      %v406 = vunpack.c.l.b16 %v391
      %v407 = vunpack.c.l.b16 %v393
      %v408 = vunpack.c.l.b16 %v395
      %v409 = vunpack.c.l.b16 %v397
      %v410 = vpack.c.b16 %v407, %v406
      %v411 = vpack.c.b16 %v409, %v408
      %v414 = vunpack.c.l.b16 %v400
      %v415 = vunpack.c.l.b16 %v401
      %v416 = vpack.c.b16 %v415, %v414
      %v419 = vsel %vm263, %v410, 0
      %v422 = vsel %vm263, %v411, 0
      %424 = vmatprep.subr.bf16.mxu0 0
      %425 = vmatpush1.bf16.msra.mxu0 0
      %426 = vmatprep.subr.bf16.mxu0 0
      %427 = vmatpush1.bf16.msra.mxu0 0
      %428 = vmatprep.subr.bf16.mxu0 0
      %429 = vmatpush1.bf16.msra.mxu0 0
      %430 = vmatprep.subr.bf16.mxu0 0
      %431 = vmatpush1.bf16.msra.mxu0 0
      %432 = vmatprep.subr.bf16.mxu0 0
      %433 = vmatpush1.bf16.msra.mxu0 0
      %434 = vmatprep.subr.bf16.mxu0 0
      %435 = vmatpush1.bf16.msra.mxu0 0
      %436 = vmatprep.subr.bf16.mxu0 0
      %437 = vmatpush1.bf16.msra.mxu0 0
      %438 = vmatprep.subr.bf16.mxu0 0
      %439 = vmatpush1.bf16.msra.mxu0 %v416
      %440 = vmatprep.subr.bf16.mxu0 0
      %441 = vmatpush2.bf16.msra.mxu0 0
      %442 = vmatprep.subr.bf16.mxu0 0
      %443 = vmatpush2.bf16.msra.mxu0 0
      %444 = vmatprep.subr.bf16.mxu0 0
      %445 = vmatpush2.bf16.msra.mxu0 0
      %446 = vmatprep.subr.bf16.mxu0 0
      %447 = vmatpush2.bf16.msra.mxu0 0
      %448 = vmatprep.subr.bf16.mxu0 0
      %449 = vmatpush2.bf16.msra.mxu0 0
      %450 = vmatprep.subr.bf16.mxu0 0
      %451 = vmatpush2.bf16.msra.mxu0 0
      %452 = vmatprep.subr.bf16.mxu0 0
      %453 = vmatpush2.bf16.msra.mxu0 0
      %454 = vmatprep.subr.bf16.mxu0 0
      %455 = vmatpush2.bf16.msra.mxu0 0
      %456 = vmatprep.mubr.bf16.mxu0 0
      %457 = vmatmul.mubr.bf16.gmra.mxu0 %v419
      %v458 = vpop.f32.mrf.mxu0
      %v459 = vadd.f32 0.0, %v458
      %v460 = vpop.f32.mrf.mxu0
      %v461 = vpop.f32.mrf.mxu0
      %v462 = vadd.f32 0.0, %v461
      %v463 = vpop.f32.mrf.mxu0
      %464 = vmatprep.mubr.bf16.mxu0 0
      %465 = vmatmul.mubr.bf16.gmra.mxu0 %v422
      %v466 = vpop.f32.mrf.mxu0
      %v467 = vadd.f32 0.0, %v466
      %v468 = vpop.f32.mrf.mxu0
      %v469 = vpop.f32.mrf.mxu0
      %v470 = vadd.f32 0.0, %v469
      %v471 = vpop.f32.mrf.mxu0
      %472 = vdwg.mxu0
      %v473 = vadd.f32 %v376, %v459
      %v474 = vadd.f32 %v379, %v462
      %v475 = vadd.f32 %v384, %v467
      %v476 = vadd.f32 %v387, %v470
      %v478 = vshrl.u32 %v391, 16
      %v480 = vrot.slane %v478, 4
      %v481 = vshll.u32 %v391, 16
      %v483 = vrot.slane %v481, 5
      %v484 = vor.u32 %v480, %v483
      %v485 = vrot.slane %v484, 4
      %v487 = vshll.u32 %v392, 16
      %v489 = vrot.slane %v487, 5
      %v490 = vsel %vm191, %v485, %v489
      %v492 = vshrl.u32 %v393, 16
      %v494 = vrot.slane %v492, 4
      %v495 = vshll.u32 %v393, 16
      %v497 = vrot.slane %v495, 5
      %v498 = vor.u32 %v494, %v497
      %v499 = vrot.slane %v498, 4
      %v501 = vshll.u32 %v394, 16
      %v503 = vrot.slane %v501, 5
      %v504 = vsel %vm191, %v499, %v503
      %v506 = vshrl.u32 %v395, 16
      %v508 = vrot.slane %v506, 4
      %v509 = vshll.u32 %v395, 16
      %v511 = vrot.slane %v509, 5
      %v512 = vor.u32 %v508, %v511
      %v513 = vrot.slane %v512, 4
      %v515 = vshll.u32 %v396, 16
      %v517 = vrot.slane %v515, 5
      %v518 = vsel %vm191, %v513, %v517
      %v520 = vshrl.u32 %v397, 16
      %v522 = vrot.slane %v520, 4
      %v523 = vshll.u32 %v397, 16
      %v525 = vrot.slane %v523, 5
      %v526 = vor.u32 %v522, %v525
      %v527 = vrot.slane %v526, 4
      %v529 = vshll.u32 %v398, 16
      %v531 = vrot.slane %v529, 5
      %v532 = vsel %vm191, %v527, %v531
      %s533 = scalar_lea.vmem %s1, 24
      %v534 = vld [vmem:[%s533] sm:$0xf]
      %v535 = vld [vmem:[%s533 + $0x4] sm:$0xf]
      %v536 = vunpack.c.l.b16 %v490
      %v537 = vunpack.c.l.b16 %v504
      %v538 = vunpack.c.l.b16 %v518
      %v539 = vunpack.c.l.b16 %v532
      %v540 = vpack.c.b16 %v537, %v536
      %v541 = vpack.c.b16 %v539, %v538
      %v544 = vunpack.c.l.b16 %v534
      %v545 = vunpack.c.l.b16 %v535
      %v546 = vpack.c.b16 %v545, %v544
      %v549 = vsel %vm263, %v540, 0
      %v552 = vsel %vm263, %v541, 0
      %554 = vmatprep.subr.bf16.mxu0 0
      %555 = vmatpush1.bf16.msra.mxu0 0
      %556 = vmatprep.subr.bf16.mxu0 0
      %557 = vmatpush1.bf16.msra.mxu0 0
      %558 = vmatprep.subr.bf16.mxu0 0
      %559 = vmatpush1.bf16.msra.mxu0 0
      %560 = vmatprep.subr.bf16.mxu0 0
      %561 = vmatpush1.bf16.msra.mxu0 0
      %562 = vmatprep.subr.bf16.mxu0 0
      %563 = vmatpush1.bf16.msra.mxu0 0
      %564 = vmatprep.subr.bf16.mxu0 0
      %565 = vmatpush1.bf16.msra.mxu0 0
      %566 = vmatprep.subr.bf16.mxu0 0
      %567 = vmatpush1.bf16.msra.mxu0 0
      %568 = vmatprep.subr.bf16.mxu0 0
      %569 = vmatpush1.bf16.msra.mxu0 %v546
      %570 = vmatprep.subr.bf16.mxu0 0
      %571 = vmatpush2.bf16.msra.mxu0 0
      %572 = vmatprep.subr.bf16.mxu0 0
      %573 = vmatpush2.bf16.msra.mxu0 0
      %574 = vmatprep.subr.bf16.mxu0 0
      %575 = vmatpush2.bf16.msra.mxu0 0
      %576 = vmatprep.subr.bf16.mxu0 0
      %577 = vmatpush2.bf16.msra.mxu0 0
      %578 = vmatprep.subr.bf16.mxu0 0
      %579 = vmatpush2.bf16.msra.mxu0 0
      %580 = vmatprep.subr.bf16.mxu0 0
      %581 = vmatpush2.bf16.msra.mxu0 0
      %582 = vmatprep.subr.bf16.mxu0 0
      %583 = vmatpush2.bf16.msra.mxu0 0
      %584 = vmatprep.subr.bf16.mxu0 0
      %585 = vmatpush2.bf16.msra.mxu0 0
      %586 = vmatprep.mubr.bf16.mxu0 0
      %587 = vmatmul.mubr.bf16.gmra.mxu0 %v549
      %v588 = vpop.f32.mrf.mxu0
      %v589 = vadd.f32 0.0, %v588
      %v590 = vpop.f32.mrf.mxu0
      %v591 = vpop.f32.mrf.mxu0
      %v592 = vadd.f32 0.0, %v591
      %v593 = vpop.f32.mrf.mxu0
      %594 = vmatprep.mubr.bf16.mxu0 0
      %595 = vmatmul.mubr.bf16.gmra.mxu0 %v552
      %v596 = vpop.f32.mrf.mxu0
      %v597 = vadd.f32 0.0, %v596
      %v598 = vpop.f32.mrf.mxu0
      %v599 = vpop.f32.mrf.mxu0
      %v600 = vadd.f32 0.0, %v599
      %v601 = vpop.f32.mrf.mxu0
      %602 = vdwg.mxu0
      %v603 = vadd.f32 %v473, %v589
      %v604 = vadd.f32 %v474, %v592
      %v605 = vadd.f32 %v475, %v597
      %v606 = vadd.f32 %v476, %v600
      %v607 = vadd.f32 %v603, %v604
      %v608 = vadd.f32 %v607, %v605
      %v609 = vadd.f32 %v608, %v606
      %v610 = vrot.slane %v609, 4
      %v611 = vadd.f32 %v609, %v610
      %v612 = vrot.slane %v611, 2
      %v613 = vadd.f32 %v611, %v612
      %v614 = vrot.slane %v613, 1
      %v615 = vadd.f32 %v613, %v614
      %v616 = vmul.f32 %v603, %v603
      %v617 = vmul.f32 %v604, %v604
      %v618 = vmul.f32 %v605, %v605
      %v619 = vmul.f32 %v606, %v606
      %v620 = vadd.f32 %v616, %v617
      %v621 = vadd.f32 %v620, %v618
      %v622 = vadd.f32 %v621, %v619
      %v623 = vrot.slane %v622, 4
      %v624 = vadd.f32 %v622, %v623
      %v625 = vrot.slane %v624, 2
      %v626 = vadd.f32 %v624, %v625
      %v627 = vrot.slane %v626, 1
      %v628 = vadd.f32 %v626, %v627
      %vm629 = vcmask 1040384
      %v630 = vsel %vm629, %v615, %v628
      %631 = vst [vmem:[%s177] sm:$0x3] %v630
      %p632 = scmp.lt.s32.totalorder %s17, 1
      %s633 = scalar_select %p632, %s17, 1
      %p634 = scmp.lt.s32.totalorder %s18, 1
      %s635 = scalar_select %p634, %s18, 1
      %s636 = smul.addr %s633, 2
      %s637 = sadd.s32 %s635, %s636
      %s638 = smul.addr %s637, 2
      %s639 = scalar_lea.vmem %s2, %s638
      // Predicated region
      $region29: #{bottleneck_forward.2} parent=27 // pred_check
        %p640 = pneg %p94
      $region30: #{bottleneck_forward.2} parent=27 // pred_check_branch
        %642 = sbr.rel (%p640) target = $region32
      $region31: #{bottleneck_forward.2} parent=27 // pred_region
        _
      $region32: #{bottleneck_forward.2} parent=27 // pred_fallthru
        _
    $region28: #{bottleneck_forward.2} parent=5 // pred_fallthru
      _
    %p643 = scmp.le.s32.totalorder 2, %s8
    // Predicated region
    $region33: #{bottleneck_forward.2} parent=5 // pred_check
      %p644 = pneg %p643
    $region34: #{bottleneck_forward.2} parent=5 // pred_check_branch
      %646 = sbr.rel (%p644) target = $region36
    $region35: #{bottleneck_forward.2} parent=5 // pred_region
      %s647 = ssub.s32 %s8, 2
      // Predicated region
      $region37: #{bottleneck_forward.2} parent=35 // pred_check
        %p648 = pneg %p100
      $region38: #{bottleneck_forward.2} parent=35 // pred_check_branch
        %650 = sbr.rel (%p648) target = $region40
      $region39: #{bottleneck_forward.2} parent=35 // pred_region
        %p651 = scmp.lt.s32.totalorder %s19, 1
        %s652 = scalar_select %p651, %s19, 1
        %p653 = scmp.lt.s32.totalorder %s20, 1
        %s654 = scalar_select %p653, %s20, 1
        %s655 = smul.addr %s652, 2
        %s656 = sadd.s32 %s654, %s655
        %s657 = smul.addr %s656, 2
        %s658 = scalar_lea.vmem %s2, %s657
      $region40: #{bottleneck_forward.2} parent=35 // pred_fallthru
        _
    $region36: #{bottleneck_forward.2} parent=5 // pred_fallthru
      _
  $region6: #{bottleneck_forward.2} parent=0 // loop_footer
    %s12 = sadd.s32 1, %s8
  $region7: #{bottleneck_forward.2} parent=0 // loop_footer_branch
    %7 = sbr.rel target = $region3
  $region8: #{bottleneck_forward.2} parent=0 // loop_exit
    _

// kernel: bottleneck_forward.3
$region0: #{bottleneck_forward.3}
  #allocation0 [shape = 'u32[]', space=smem, size = 0x4, offset = 0x4, fixed_abs, tag = 'smem constant byte address 0x4 - core index']
  #allocation1 [shape = 'u32[144,128]{1,0:T(1,128)}', space=vmem, size = 0x12000, scoped, tag = 'internal scratch']
  %s0 = inlined_call_operand.vmem [shape: bf16[2,2,5,9,16], index: 0, kind: input, shape index: {}]
  %s1 = inlined_call_operand.vmem [shape: bf16[2,2,16,128], index: 1, kind: input, shape index: {}]
  %s2 = inlined_call_operand.vmem [shape: f32[1,128], index: 2, kind: input, shape index: {}]
  %s3 = inlined_call_operand.vmem [shape: f32[1,128], index: 3, kind: input, shape index: {}]
  %s4 = inlined_call_operand.vmem [shape: f32[2,8,8,128], index: 4, kind: output, shape index: {}]
  %s5 = sld [smem:[#allocation0]]
  $region49: #{bottleneck_forward.3} parent=0
    _
  %s7 = ssub.s32 1, %s5
  %s8 = scalar_select 0, %s7, %s5
  loop: start=0, step=1, limit=6
  $region2: #{bottleneck_forward.3} parent=0 // loop_pre_header
    _
  $region3: #{bottleneck_forward.3} parent=0 // loop_header
    %s10 = sphi 0, %s14
    %p11 = scmp.ge.s32.totalorder %s10, 6
    %s17 = sphi 0, %s29
    %s18 = sphi 0, %s25
    %s19 = sphi 0, %s17
    %s20 = sphi 0, %s18
    %s21 = sphi 0, %s19
    %s22 = sphi 0, %s20
    %s34 = sphi 0, %s36
    %s37 = sphi 0, %s34
    %s38 = sphi 0, %s37
    %s54 = sphi 0, %s38
    %s58 = sphi 0, %s58
    %s60 = sphi 0, %s58
    %s61 = sphi 0, %s60
    %s75 = sphi 0, %s61
    %s79 = sphi 0, %s79
    %s81 = sphi 0, %s79
    %s82 = sphi 0, %s81
    %s96 = sphi 0, %s82
    %s100 = sphi 0, %s100
    %s102 = sphi 0, %s100
    %s103 = sphi 0, %s102
    %s117 = sphi 0, %s103
    %s125 = sphi 0, %s127
    %s128 = sphi 0, %s125
    %s129 = sphi 0, %s128
    %s145 = sphi 0, %s129
  $region4: #{bottleneck_forward.3} parent=0 // loop_header_branch
    %13 = sbr.rel (%p11) target = $region8
  $region5: #{bottleneck_forward.3} parent=0 // loop_body
    %s15 = ssub.s32 %s10, 1
    %s16 = ssub.s32 %s10, 2
    %s23 = sadd.s32 1, %s18
    %p24 = scmp.ge.s32.totalorder %s23, 2
    %s25 = scalar_select %p24, 0, %s23
    %s26 = sadd.s32 1, %s17
    %s27 = scalar_select %p24, %s26, %s17
    %p28 = scmp.ge.s32.totalorder %s27, 2
    %s29 = scalar_select %p28, 0, %s27
    %s30 = ssub.s32 %s17, %s29
    %s31 = ssub.s32 %s18, %s25
    %s32 = sor.u32 %s30, %s31
    %p33 = scmp.eq.s32.totalorder %s32, 0
    %s35 = sadd.s32 %s34, 1
    %s36 = scalar_select %p33, %s34, %s35
    %p39 = pneg %p33
    %p40 = scmp.eq.s32.totalorder %s10, 3
    %p41 = por %p39, %p40
    %p42 = scmp.ne.s32.totalorder %s34, %s37
    %p43 = scmp.eq.s32.totalorder %s10, 0
    %p44 = por %p42, %p43
    %p45 = scmp.ne.s32.totalorder %s34, %s37
    %p46 = scmp.eq.s32.totalorder %s15, 3
    %p47 = por %p45, %p46
    %p48 = scmp.ne.s32.totalorder %s37, %s38
    %p49 = scmp.eq.s32.totalorder %s15, 0
    %p50 = por %p48, %p49
    %p51 = scmp.ne.s32.totalorder %s37, %s38
    %p52 = scmp.eq.s32.totalorder %s16, 3
    %p53 = por %p51, %p52
    %p55 = scmp.ne.s32.totalorder %s38, %s54
    %p56 = scmp.eq.s32.totalorder %s16, 0
    %p57 = por %p55, %p56
    %s59 = sadd.s32 %s58, 1
    %p62 = scmp.eq.s32.totalorder %s10, 3
    %p63 = scmp.ne.s32.totalorder %s58, %s60
    %p64 = scmp.eq.s32.totalorder %s10, 0
    %p65 = por %p63, %p64
    %p66 = scmp.ne.s32.totalorder %s58, %s60
    %p67 = scmp.eq.s32.totalorder %s15, 3
    %p68 = por %p66, %p67
    %p69 = scmp.ne.s32.totalorder %s60, %s61
    %p70 = scmp.eq.s32.totalorder %s15, 0
    %p71 = por %p69, %p70
    %p72 = scmp.ne.s32.totalorder %s60, %s61
    %p73 = scmp.eq.s32.totalorder %s16, 3
    %p74 = por %p72, %p73
    %p76 = scmp.ne.s32.totalorder %s61, %s75
    %p77 = scmp.eq.s32.totalorder %s16, 0
    %p78 = por %p76, %p77
    %s80 = sadd.s32 %s79, 1
    %p83 = scmp.eq.s32.totalorder %s10, 3
    %p84 = scmp.ne.s32.totalorder %s79, %s81
    %p85 = scmp.eq.s32.totalorder %s10, 0
    %p86 = por %p84, %p85
    %p87 = scmp.ne.s32.totalorder %s79, %s81
    %p88 = scmp.eq.s32.totalorder %s15, 3
    %p89 = por %p87, %p88
    %p90 = scmp.ne.s32.totalorder %s81, %s82
    %p91 = scmp.eq.s32.totalorder %s15, 0
    %p92 = por %p90, %p91
    %p93 = scmp.ne.s32.totalorder %s81, %s82
    %p94 = scmp.eq.s32.totalorder %s16, 3
    %p95 = por %p93, %p94
    %p97 = scmp.ne.s32.totalorder %s82, %s96
    %p98 = scmp.eq.s32.totalorder %s16, 0
    %p99 = por %p97, %p98
    %s101 = sadd.s32 %s100, 1
    %p104 = scmp.eq.s32.totalorder %s10, 3
    %p105 = scmp.ne.s32.totalorder %s100, %s102
    %p106 = scmp.eq.s32.totalorder %s10, 0
    %p107 = por %p105, %p106
    %p108 = scmp.ne.s32.totalorder %s100, %s102
    %p109 = scmp.eq.s32.totalorder %s15, 3
    %p110 = por %p108, %p109
    %p111 = scmp.ne.s32.totalorder %s102, %s103
    %p112 = scmp.eq.s32.totalorder %s15, 0
    %p113 = por %p111, %p112
    %p114 = scmp.ne.s32.totalorder %s102, %s103
    %p115 = scmp.eq.s32.totalorder %s16, 3
    %p116 = por %p114, %p115
    %p118 = scmp.ne.s32.totalorder %s103, %s117
    %p119 = scmp.eq.s32.totalorder %s16, 0
    %p120 = por %p118, %p119
    %s121 = ssub.s32 %s17, %s29
    %s122 = ssub.s32 %s18, %s25
    %s123 = sor.u32 %s121, %s122
    %p124 = scmp.eq.s32.totalorder %s123, 0
    %s126 = sadd.s32 %s125, 1
    %s127 = scalar_select %p124, %s125, %s126
    %p130 = pneg %p124
    %p131 = scmp.eq.s32.totalorder %s10, 3
    %p132 = por %p130, %p131
    %p133 = scmp.ne.s32.totalorder %s125, %s128
    %p134 = scmp.eq.s32.totalorder %s10, 0
    %p135 = por %p133, %p134
    %p136 = scmp.ne.s32.totalorder %s125, %s128
    %p137 = scmp.eq.s32.totalorder %s15, 3
    %p138 = por %p136, %p137
    %p139 = scmp.ne.s32.totalorder %s128, %s129
    %p140 = scmp.eq.s32.totalorder %s15, 0
    %p141 = por %p139, %p140
    %p142 = scmp.ne.s32.totalorder %s128, %s129
    %p143 = scmp.eq.s32.totalorder %s16, 3
    %p144 = por %p142, %p143
    %p146 = scmp.ne.s32.totalorder %s129, %s145
    %p147 = scmp.eq.s32.totalorder %s16, 0
    %p148 = por %p146, %p147
    %p149 = scmp.le.s32.totalorder 1, %s10
    %p150 = scmp.lt.s32.totalorder %s10, 5
    %p151 = pnand %p149, %p150
    %p152 = pneg %p151
    // Predicated region
    $region9: #{bottleneck_forward.3} parent=5 // pred_check
      _
    $region10: #{bottleneck_forward.3} parent=5 // pred_check_branch
      %154 = sbr.rel (%p151) target = $region12
    $region11: #{bottleneck_forward.3} parent=5 // pred_region
      %s155 = ssub.s32 %s10, 1
      // Predicated region
      $region13: #{bottleneck_forward.3} parent=11 // pred_check
        %p156 = pneg %p71
      $region14: #{bottleneck_forward.3} parent=11 // pred_check_branch
        %158 = sbr.rel (%p156) target = $region16
      $region15: #{bottleneck_forward.3} parent=11 // pred_region
        _
      $region16: #{bottleneck_forward.3} parent=11 // pred_fallthru
        _
      // Predicated region
      $region17: #{bottleneck_forward.3} parent=11 // pred_check
        %p159 = pneg %p92
      $region18: #{bottleneck_forward.3} parent=11 // pred_check_branch
        %161 = sbr.rel (%p159) target = $region20
      $region19: #{bottleneck_forward.3} parent=11 // pred_region
        _
      $region20: #{bottleneck_forward.3} parent=11 // pred_fallthru
        _
      // Predicated region
      $region21: #{bottleneck_forward.3} parent=11 // pred_check
        %p162 = pneg %p113
      $region22: #{bottleneck_forward.3} parent=11 // pred_check_branch
        %164 = sbr.rel (%p162) target = $region24
      $region23: #{bottleneck_forward.3} parent=11 // pred_region
        _
      $region24: #{bottleneck_forward.3} parent=11 // pred_fallthru
        _
    $region12: #{bottleneck_forward.3} parent=5 // pred_fallthru
      _
    %p165 = scmp.lt.s32.totalorder %s10, 4
    // Predicated region
    $region25: #{bottleneck_forward.3} parent=5 // pred_check
      %p166 = pneg %p165
    $region26: #{bottleneck_forward.3} parent=5 // pred_check_branch
      %168 = sbr.rel (%p166) target = $region28
    $region27: #{bottleneck_forward.3} parent=5 // pred_region
      // Predicated region
      $region29: #{bottleneck_forward.3} parent=27 // pred_check
        %p169 = pneg %p44
      $region30: #{bottleneck_forward.3} parent=27 // pred_check_branch
        %171 = sbr.rel (%p169) target = $region32
      $region31: #{bottleneck_forward.3} parent=27 // pred_region
        %p172 = scmp.lt.s32.totalorder %s17, 1
        %s173 = scalar_select %p172, %s17, 1
        %p174 = scmp.lt.s32.totalorder %s18, 1
        %s175 = scalar_select %p174, %s18, 1
        %s176 = smul.addr %s175, 10
        %s177 = smul.addr %s173, 20
        %s178 = sadd.s32 %s176, %s177
        %s179 = smul.addr %s178, 4
        %s180 = scalar_lea.vmem %s0, %s179
      $region32: #{bottleneck_forward.3} parent=27 // pred_fallthru
        _
    $region28: #{bottleneck_forward.3} parent=5 // pred_fallthru
      _
    %p181 = scmp.le.s32.totalorder 1, %s10
    %p182 = scmp.lt.s32.totalorder %s10, 5
    %p183 = pnand %p181, %p182
    %p184 = pneg %p183
    // Predicated region
    $region33: #{bottleneck_forward.3} parent=5 // pred_check
      _
    $region34: #{bottleneck_forward.3} parent=5 // pred_check_branch
      %186 = sbr.rel (%p183) target = $region36
    $region35: #{bottleneck_forward.3} parent=5 // pred_region
      %s187 = ssub.s32 %s10, 1
      %p188 = scmp.lt.s32.totalorder %s19, 1
      %s189 = scalar_select %p188, %s19, 1
      %p190 = scmp.lt.s32.totalorder %s20, 1
      %s191 = scalar_select %p190, %s20, 1
      %s192 = smul.addr %s191, 10
      %s193 = smul.addr %s189, 20
      %s194 = sadd.s32 %s192, %s193
      %s195 = smul.addr %s194, 4
      %s196 = scalar_lea.vmem %s0, %s195
      %p197 = pneg %p50
      %p198 = pneg %p47
      %p199 = pneg %p71
      %p200 = pneg %p68
      %p201 = pneg %p92
      %p202 = pneg %p89
      %p203 = pneg %p113
      %p204 = pneg %p110
      %p205 = pneg %p141
      %p206 = pneg %p138
      %s207 = smul.u32 4, %s20
      %p208 = scmp.lt.s32.totalorder %s19, 1
      %s209 = scalar_select %p208, %s19, 1
      %p210 = scmp.lt.s32.totalorder %s207, 7
      %s211 = scalar_select %p210, %s207, 7
      %s212 = smul.addr %s209, 8
      %s213 = sadd.s32 %s211, %s212
      %s214 = smul.addr %s213, 8
      %s215 = scalar_lea.vmem %s4, %s214
      %p216 = scmp.lt.s32.totalorder %s19, 1
      %s217 = scalar_select %p216, %s19, 1
      %p218 = scmp.lt.s32.totalorder %s20, 1
      %s219 = scalar_select %p218, %s20, 1
      %s220 = smul.addr %s219, 10
      %s221 = smul.addr %s217, 20
      %s222 = sadd.s32 %s220, %s221
      %s223 = smul.addr %s222, 4
      %s224 = scalar_lea.vmem %s0, %s223
      %s225 = smul.u32 4, %s20
      %p226 = scmp.lt.s32.totalorder %s19, 1
      %s227 = scalar_select %p226, %s19, 1
      %p228 = scmp.lt.s32.totalorder %s225, 7
      %s229 = scalar_select %p228, %s225, 7
      %s230 = smul.addr %s227, 8
      %s231 = sadd.s32 %s229, %s230
      %s232 = smul.addr %s231, 8
      %s233 = scalar_lea.vmem %s4, %s232
      %s234 = smul.u32 4, %s20
      %v236 = vld [vmem:[%s224] sm:$0xf]
      %v237 = vld [vmem:[%s224 + $0x4] sm:$0x1]
      %v238 = vld [vmem:[%s224 + $0x8] sm:$0xf]
      %v239 = vld [vmem:[%s224 + $0xc] sm:$0x1]
      %v240 = vld [vmem:[%s224 + $0x10] sm:$0xf]
      %v241 = vld [vmem:[%s224 + $0x14] sm:$0x1]
      %v242 = vld [vmem:[%s224 + $0x18] sm:$0xf]
      %v243 = vld [vmem:[%s224 + $0x1c] sm:$0x1]
      %v244 = vld [vmem:[%s1] sm:$0xf]
      %v245 = vld [vmem:[%s1 + $0x4] sm:$0xf]
      %vm246 = vsmask.f32 3328
      %vm247 = vsmask.f32 7440
      %vm248 = vmor %vm246, %vm247
      %v250 = vshrl.u32 %v236, 16
      %v252 = vrot.slane %v250, 4
      %v253 = vshll.u32 %v236, 16
      %v255 = vrot.slane %v253, 5
      %v256 = vor.u32 %v252, %v255
      %v257 = vrot.slane %v256, 4
      %v259 = vshll.u32 %v237, 16
      %v261 = vrot.slane %v259, 5
      %v262 = vsel %vm248, %v257, %v261
      %v264 = vshrl.u32 %v238, 16
      %v266 = vrot.slane %v264, 4
      %v267 = vshll.u32 %v238, 16
      %v269 = vrot.slane %v267, 5
      %v270 = vor.u32 %v266, %v269
      %v271 = vrot.slane %v270, 4
      %v273 = vshll.u32 %v239, 16
      %v275 = vrot.slane %v273, 5
      %v276 = vsel %vm248, %v271, %v275
      %v278 = vshrl.u32 %v240, 16
      %v280 = vrot.slane %v278, 4
      %v281 = vshll.u32 %v240, 16
      %v283 = vrot.slane %v281, 5
      %v284 = vor.u32 %v280, %v283
      %v285 = vrot.slane %v284, 4
      %v287 = vshll.u32 %v241, 16
      %v289 = vrot.slane %v287, 5
      %v290 = vsel %vm248, %v285, %v289
      %v292 = vshrl.u32 %v242, 16
      %v294 = vrot.slane %v292, 4
      %v295 = vshll.u32 %v242, 16
      %v297 = vrot.slane %v295, 5
      %v298 = vor.u32 %v294, %v297
      %v299 = vrot.slane %v298, 4
      %v301 = vshll.u32 %v243, 16
      %v303 = vrot.slane %v301, 5
      %v304 = vsel %vm248, %v299, %v303
      %s305 = scalar_lea.vmem %s1, 8
      %v306 = vld [vmem:[%s305] sm:$0xf]
      %v307 = vld [vmem:[%s305 + $0x4] sm:$0xf]
      %v308 = vunpack.c.l.b16 %v262
      %v309 = vunpack.c.l.b16 %v276
      %v310 = vunpack.c.l.b16 %v290
      %v311 = vunpack.c.l.b16 %v304
      %v312 = vpack.c.b16 %v309, %v308
      %v313 = vpack.c.b16 %v311, %v310
      %v316 = vunpack.c.l.b16 %v306
      %v317 = vunpack.c.l.b16 %v307
      %v318 = vpack.c.b16 %v317, %v316
      %vm320 = vcmask 130048
      %v322 = vsel %vm320, %v312, 0
      %v325 = vsel %vm320, %v313, 0
      %327 = vmatprep.subr.bf16.mxu0 0
      %328 = vmatpush1.bf16.msra.mxu0 0
      %329 = vmatprep.subr.bf16.mxu0 0
      %330 = vmatpush1.bf16.msra.mxu0 0
      %331 = vmatprep.subr.bf16.mxu0 0
      %332 = vmatpush1.bf16.msra.mxu0 0
      %333 = vmatprep.subr.bf16.mxu0 0
      %334 = vmatpush1.bf16.msra.mxu0 0
      %335 = vmatprep.subr.bf16.mxu0 0
      %336 = vmatpush1.bf16.msra.mxu0 0
      %337 = vmatprep.subr.bf16.mxu0 0
      %338 = vmatpush1.bf16.msra.mxu0 0
      %339 = vmatprep.subr.bf16.mxu0 0
      %340 = vmatpush1.bf16.msra.mxu0 0
      %341 = vmatprep.subr.bf16.mxu0 0
      %342 = vmatpush1.bf16.msra.mxu0 %v318
      %343 = vmatprep.subr.bf16.mxu0 0
      %344 = vmatpush2.bf16.msra.mxu0 0
      %345 = vmatprep.subr.bf16.mxu0 0
      %346 = vmatpush2.bf16.msra.mxu0 0
      %347 = vmatprep.subr.bf16.mxu0 0
      %348 = vmatpush2.bf16.msra.mxu0 0
      %349 = vmatprep.subr.bf16.mxu0 0
      %350 = vmatpush2.bf16.msra.mxu0 0
      %351 = vmatprep.subr.bf16.mxu0 0
      %352 = vmatpush2.bf16.msra.mxu0 0
      %353 = vmatprep.subr.bf16.mxu0 0
      %354 = vmatpush2.bf16.msra.mxu0 0
      %355 = vmatprep.subr.bf16.mxu0 0
      %356 = vmatpush2.bf16.msra.mxu0 0
      %357 = vmatprep.subr.bf16.mxu0 0
      %358 = vmatpush2.bf16.msra.mxu0 0
      %359 = vmatprep.mubr.bf16.mxu0 0
      %360 = vmatmul.mubr.bf16.gmra.mxu0 %v322
      %v361 = vpop.f32.mrf.mxu0
      %v362 = vadd.f32 0.0, %v361
      %v363 = vpop.f32.mrf.mxu0
      %v364 = vpop.f32.mrf.mxu0
      %v365 = vadd.f32 0.0, %v364
      %v366 = vpop.f32.mrf.mxu0
      %367 = vmatprep.mubr.bf16.mxu0 0
      %368 = vmatmul.mubr.bf16.gmra.mxu0 %v325
      %v369 = vpop.f32.mrf.mxu0
      %v370 = vadd.f32 0.0, %v369
      %v371 = vpop.f32.mrf.mxu0
      %v372 = vpop.f32.mrf.mxu0
      %v373 = vadd.f32 0.0, %v372
      %v374 = vpop.f32.mrf.mxu0
      %375 = vdwg.mxu0
      %v380 = vunpack.c.l.b16 %v236
      %v381 = vunpack.c.l.b16 %v238
      %v382 = vunpack.c.l.b16 %v240
      %v383 = vunpack.c.l.b16 %v242
      %v384 = vpack.c.b16 %v381, %v380
      %v385 = vpack.c.b16 %v383, %v382
      %v388 = vunpack.c.l.b16 %v244
      %v389 = vunpack.c.l.b16 %v245
      %v390 = vpack.c.b16 %v389, %v388
      %v393 = vsel %vm320, %v384, 0
      %v396 = vsel %vm320, %v385, 0
      %398 = vmatprep.subr.bf16.mxu0 0
      %399 = vmatpush1.bf16.msra.mxu0 0
      %400 = vmatprep.subr.bf16.mxu0 0
      %401 = vmatpush1.bf16.msra.mxu0 0
      %402 = vmatprep.subr.bf16.mxu0 0
      %403 = vmatpush1.bf16.msra.mxu0 0
      %404 = vmatprep.subr.bf16.mxu0 0
      %405 = vmatpush1.bf16.msra.mxu0 0
      %406 = vmatprep.subr.bf16.mxu0 0
      %407 = vmatpush1.bf16.msra.mxu0 0
      %408 = vmatprep.subr.bf16.mxu0 0
      %409 = vmatpush1.bf16.msra.mxu0 0
      %410 = vmatprep.subr.bf16.mxu0 0
      %411 = vmatpush1.bf16.msra.mxu0 0
      %412 = vmatprep.subr.bf16.mxu0 0
      %413 = vmatpush1.bf16.msra.mxu0 %v390
      %414 = vmatprep.subr.bf16.mxu0 0
      %415 = vmatpush2.bf16.msra.mxu0 0
      %416 = vmatprep.subr.bf16.mxu0 0
      %417 = vmatpush2.bf16.msra.mxu0 0
      %418 = vmatprep.subr.bf16.mxu0 0
      %419 = vmatpush2.bf16.msra.mxu0 0
      %420 = vmatprep.subr.bf16.mxu0 0
      %421 = vmatpush2.bf16.msra.mxu0 0
      %422 = vmatprep.subr.bf16.mxu0 0
      %423 = vmatpush2.bf16.msra.mxu0 0
      %424 = vmatprep.subr.bf16.mxu0 0
      %425 = vmatpush2.bf16.msra.mxu0 0
      %426 = vmatprep.subr.bf16.mxu0 0
      %427 = vmatpush2.bf16.msra.mxu0 0
      %428 = vmatprep.subr.bf16.mxu0 0
      %429 = vmatpush2.bf16.msra.mxu0 0
      %430 = vmatprep.mubr.bf16.mxu0 0
      %431 = vmatmul.mubr.bf16.gmra.mxu0 %v393
      %v432 = vpop.f32.mrf.mxu0
      %v433 = vadd.f32 %v362, %v432
      %v434 = vpop.f32.mrf.mxu0
      %v435 = vpop.f32.mrf.mxu0
      %v436 = vadd.f32 %v365, %v435
      %v437 = vpop.f32.mrf.mxu0
      %438 = vmatprep.mubr.bf16.mxu0 0
      %439 = vmatmul.mubr.bf16.gmra.mxu0 %v396
      %v440 = vpop.f32.mrf.mxu0
      %v441 = vadd.f32 %v370, %v440
      %v442 = vpop.f32.mrf.mxu0
      %v443 = vpop.f32.mrf.mxu0
      %v444 = vadd.f32 %v373, %v443
      %v445 = vpop.f32.mrf.mxu0
      %446 = vdwg.mxu0
      %s447 = scalar_lea.vmem %s224, 8
      %v448 = vld [vmem:[%s447] sm:$0xf]
      %v449 = vld [vmem:[%s447 + $0x4] sm:$0x1]
      %v450 = vld [vmem:[%s447 + $0x8] sm:$0xf]
      %v451 = vld [vmem:[%s447 + $0xc] sm:$0x1]
      %v452 = vld [vmem:[%s447 + $0x10] sm:$0xf]
      %v453 = vld [vmem:[%s447 + $0x14] sm:$0x1]
      %v454 = vld [vmem:[%s447 + $0x18] sm:$0xf]
      %v455 = vld [vmem:[%s447 + $0x1c] sm:$0x1]
      %s456 = scalar_lea.vmem %s1, 16
      %v457 = vld [vmem:[%s456] sm:$0xf]
      %v458 = vld [vmem:[%s456 + $0x4] sm:$0xf]
      %v463 = vunpack.c.l.b16 %v448
      %v464 = vunpack.c.l.b16 %v450
      %v465 = vunpack.c.l.b16 %v452
      %v466 = vunpack.c.l.b16 %v454
      %v467 = vpack.c.b16 %v464, %v463
      %v468 = vpack.c.b16 %v466, %v465
      %v471 = vunpack.c.l.b16 %v457
      %v472 = vunpack.c.l.b16 %v458
      %v473 = vpack.c.b16 %v472, %v471
      %v476 = vsel %vm320, %v467, 0
      %v479 = vsel %vm320, %v468, 0
      %481 = vmatprep.subr.bf16.mxu0 0
      %482 = vmatpush1.bf16.msra.mxu0 0
      %483 = vmatprep.subr.bf16.mxu0 0
      %484 = vmatpush1.bf16.msra.mxu0 0
      %485 = vmatprep.subr.bf16.mxu0 0
      %486 = vmatpush1.bf16.msra.mxu0 0
      %487 = vmatprep.subr.bf16.mxu0 0
      %488 = vmatpush1.bf16.msra.mxu0 0
      %489 = vmatprep.subr.bf16.mxu0 0
      %490 = vmatpush1.bf16.msra.mxu0 0
      %491 = vmatprep.subr.bf16.mxu0 0
      %492 = vmatpush1.bf16.msra.mxu0 0
      %493 = vmatprep.subr.bf16.mxu0 0
      %494 = vmatpush1.bf16.msra.mxu0 0
      %495 = vmatprep.subr.bf16.mxu0 0
      %496 = vmatpush1.bf16.msra.mxu0 %v473
      %497 = vmatprep.subr.bf16.mxu0 0
      %498 = vmatpush2.bf16.msra.mxu0 0
      %499 = vmatprep.subr.bf16.mxu0 0
      %500 = vmatpush2.bf16.msra.mxu0 0
      %501 = vmatprep.subr.bf16.mxu0 0
      %502 = vmatpush2.bf16.msra.mxu0 0
      %503 = vmatprep.subr.bf16.mxu0 0
      %504 = vmatpush2.bf16.msra.mxu0 0
      %505 = vmatprep.subr.bf16.mxu0 0
      %506 = vmatpush2.bf16.msra.mxu0 0
      %507 = vmatprep.subr.bf16.mxu0 0
      %508 = vmatpush2.bf16.msra.mxu0 0
      %509 = vmatprep.subr.bf16.mxu0 0
      %510 = vmatpush2.bf16.msra.mxu0 0
      %511 = vmatprep.subr.bf16.mxu0 0
      %512 = vmatpush2.bf16.msra.mxu0 0
      %513 = vmatprep.mubr.bf16.mxu0 0
      %514 = vmatmul.mubr.bf16.gmra.mxu0 %v476
      %v515 = vpop.f32.mrf.mxu0
      %v516 = vadd.f32 0.0, %v515
      %v517 = vpop.f32.mrf.mxu0
      %v518 = vpop.f32.mrf.mxu0
      %v519 = vadd.f32 0.0, %v518
      %v520 = vpop.f32.mrf.mxu0
      %521 = vmatprep.mubr.bf16.mxu0 0
      %522 = vmatmul.mubr.bf16.gmra.mxu0 %v479
      %v523 = vpop.f32.mrf.mxu0
      %v524 = vadd.f32 0.0, %v523
      %v525 = vpop.f32.mrf.mxu0
      %v526 = vpop.f32.mrf.mxu0
      %v527 = vadd.f32 0.0, %v526
      %v528 = vpop.f32.mrf.mxu0
      %529 = vdwg.mxu0
      %v530 = vadd.f32 %v433, %v516
      %v531 = vadd.f32 %v436, %v519
      %v532 = vadd.f32 %v441, %v524
      %v533 = vadd.f32 %v444, %v527
      %v535 = vshrl.u32 %v448, 16
      %v537 = vrot.slane %v535, 4
      %v538 = vshll.u32 %v448, 16
      %v540 = vrot.slane %v538, 5
      %v541 = vor.u32 %v537, %v540
      %v542 = vrot.slane %v541, 4
      %v544 = vshll.u32 %v449, 16
      %v546 = vrot.slane %v544, 5
      %v547 = vsel %vm248, %v542, %v546
      %v549 = vshrl.u32 %v450, 16
      %v551 = vrot.slane %v549, 4
      %v552 = vshll.u32 %v450, 16
      %v554 = vrot.slane %v552, 5
      %v555 = vor.u32 %v551, %v554
      %v556 = vrot.slane %v555, 4
      %v558 = vshll.u32 %v451, 16
      %v560 = vrot.slane %v558, 5
      %v561 = vsel %vm248, %v556, %v560
      %v563 = vshrl.u32 %v452, 16
      %v565 = vrot.slane %v563, 4
      %v566 = vshll.u32 %v452, 16
      %v568 = vrot.slane %v566, 5
      %v569 = vor.u32 %v565, %v568
      %v570 = vrot.slane %v569, 4
      %v572 = vshll.u32 %v453, 16
      %v574 = vrot.slane %v572, 5
      %v575 = vsel %vm248, %v570, %v574
      %v577 = vshrl.u32 %v454, 16
      %v579 = vrot.slane %v577, 4
      %v580 = vshll.u32 %v454, 16
      %v582 = vrot.slane %v580, 5
      %v583 = vor.u32 %v579, %v582
      %v584 = vrot.slane %v583, 4
      %v586 = vshll.u32 %v455, 16
      %v588 = vrot.slane %v586, 5
      %v589 = vsel %vm248, %v584, %v588
      %s590 = scalar_lea.vmem %s1, 24
      %v591 = vld [vmem:[%s590] sm:$0xf]
      %v592 = vld [vmem:[%s590 + $0x4] sm:$0xf]
      %v593 = vunpack.c.l.b16 %v547
      %v594 = vunpack.c.l.b16 %v561
      %v595 = vunpack.c.l.b16 %v575
      %v596 = vunpack.c.l.b16 %v589
      %v597 = vpack.c.b16 %v594, %v593
      %v598 = vpack.c.b16 %v596, %v595
      %v601 = vunpack.c.l.b16 %v591
      %v602 = vunpack.c.l.b16 %v592
      %v603 = vpack.c.b16 %v602, %v601
      %v606 = vsel %vm320, %v597, 0
      %v609 = vsel %vm320, %v598, 0
      %611 = vmatprep.subr.bf16.mxu0 0
      %612 = vmatpush1.bf16.msra.mxu0 0
      %613 = vmatprep.subr.bf16.mxu0 0
      %614 = vmatpush1.bf16.msra.mxu0 0
      %615 = vmatprep.subr.bf16.mxu0 0
      %616 = vmatpush1.bf16.msra.mxu0 0
      %617 = vmatprep.subr.bf16.mxu0 0
      %618 = vmatpush1.bf16.msra.mxu0 0
      %619 = vmatprep.subr.bf16.mxu0 0
      %620 = vmatpush1.bf16.msra.mxu0 0
      %621 = vmatprep.subr.bf16.mxu0 0
      %622 = vmatpush1.bf16.msra.mxu0 0
      %623 = vmatprep.subr.bf16.mxu0 0
      %624 = vmatpush1.bf16.msra.mxu0 0
      %625 = vmatprep.subr.bf16.mxu0 0
      %626 = vmatpush1.bf16.msra.mxu0 %v603
      %627 = vmatprep.subr.bf16.mxu0 0
      %628 = vmatpush2.bf16.msra.mxu0 0
      %629 = vmatprep.subr.bf16.mxu0 0
      %630 = vmatpush2.bf16.msra.mxu0 0
      %631 = vmatprep.subr.bf16.mxu0 0
      %632 = vmatpush2.bf16.msra.mxu0 0
      %633 = vmatprep.subr.bf16.mxu0 0
      %634 = vmatpush2.bf16.msra.mxu0 0
      %635 = vmatprep.subr.bf16.mxu0 0
      %636 = vmatpush2.bf16.msra.mxu0 0
      %637 = vmatprep.subr.bf16.mxu0 0
      %638 = vmatpush2.bf16.msra.mxu0 0
      %639 = vmatprep.subr.bf16.mxu0 0
      %640 = vmatpush2.bf16.msra.mxu0 0
      %641 = vmatprep.subr.bf16.mxu0 0
      %642 = vmatpush2.bf16.msra.mxu0 0
      %643 = vmatprep.mubr.bf16.mxu0 0
      %644 = vmatmul.mubr.bf16.gmra.mxu0 %v606
      %v645 = vpop.f32.mrf.mxu0
      %v646 = vadd.f32 0.0, %v645
      %v647 = vpop.f32.mrf.mxu0
      %v648 = vpop.f32.mrf.mxu0
      %v649 = vadd.f32 0.0, %v648
      %v650 = vpop.f32.mrf.mxu0
      %651 = vmatprep.mubr.bf16.mxu0 0
      %652 = vmatmul.mubr.bf16.gmra.mxu0 %v609
      %v653 = vpop.f32.mrf.mxu0
      %v654 = vadd.f32 0.0, %v653
      %v655 = vpop.f32.mrf.mxu0
      %v656 = vpop.f32.mrf.mxu0
      %v657 = vadd.f32 0.0, %v656
      %v658 = vpop.f32.mrf.mxu0
      %659 = vdwg.mxu0
      %v660 = vadd.f32 %v530, %v646
      %v661 = vadd.f32 %v531, %v649
      %v662 = vadd.f32 %v532, %v654
      %v663 = vadd.f32 %v533, %v657
      %v664 = vld [vmem:[%s2] sm:$0x1]
      %v666 = vlaneseq
      %v667 = vshrl.u32 %v666, 7
      %v668 = vsub.s32 0, %v667
      %v669 = vrot.slane %v664, %v668
      %v671 = vmul.f32 %v660, %v669
      %v672 = vmul.f32 %v661, %v669
      %v673 = vmul.f32 %v662, %v669
      %v674 = vmul.f32 %v663, %v669
      %v675 = vld [vmem:[%s3] sm:$0x1]
      %v677 = vlaneseq
      %v678 = vshrl.u32 %v677, 7
      %v679 = vsub.s32 0, %v678
      %v680 = vrot.slane %v675, %v679
      %v682 = vadd.f32 %v671, %v680
      %v683 = vadd.f32 %v672, %v680
      %v684 = vadd.f32 %v673, %v680
      %v685 = vadd.f32 %v674, %v680
      %vm686 = vcmp.gt.f32.partialorder %v682, 0.0
      %vm687 = vcmp.gt.f32.partialorder %v683, 0.0
      %vm688 = vcmp.gt.f32.partialorder %v684, 0.0
      %vm689 = vcmp.gt.f32.partialorder %v685, 0.0
      %v690 = vmul.f32 %v682, 0.2
      %v691 = vmul.f32 %v683, 0.2
      %v692 = vmul.f32 %v684, 0.2
      %v693 = vmul.f32 %v685, 0.2
      %v694 = vsel %vm686, %v682, %v690
      %v695 = vsel %vm687, %v683, %v691
      %v696 = vsel %vm688, %v684, %v692
      %v697 = vsel %vm689, %v685, %v693
      %698 = vst [vmem:[%s233] sm:$0xff] %v694
      %699 = vst [vmem:[%s233 + $0x8] sm:$0xff] %v695
      %700 = vst [vmem:[%s233 + $0x10] sm:$0xff] %v696
      %701 = vst [vmem:[%s233 + $0x18] sm:$0xff] %v697
      %s702 = smul.u32 4, %s20
      %p703 = scmp.lt.s32.totalorder %s19, 1
      %s704 = scalar_select %p703, %s19, 1
      %p705 = scmp.lt.s32.totalorder %s702, 7
      %s706 = scalar_select %p705, %s702, 7
      %s707 = smul.addr %s704, 8
      %s708 = sadd.s32 %s706, %s707
      %s709 = smul.addr %s708, 8
      %s710 = scalar_lea.vmem %s4, %s709
      // Predicated region
      $region37: #{bottleneck_forward.3} parent=35 // pred_check
        %p711 = pneg %p138
      $region38: #{bottleneck_forward.3} parent=35 // pred_check_branch
        %713 = sbr.rel (%p711) target = $region40
      $region39: #{bottleneck_forward.3} parent=35 // pred_region
        %s714 = smul.u32 4, %s20
      $region40: #{bottleneck_forward.3} parent=35 // pred_fallthru
        _
    $region36: #{bottleneck_forward.3} parent=5 // pred_fallthru
      _
    %p715 = scmp.le.s32.totalorder 2, %s10
    // Predicated region
    $region41: #{bottleneck_forward.3} parent=5 // pred_check
      %p716 = pneg %p715
    $region42: #{bottleneck_forward.3} parent=5 // pred_check_branch
      %718 = sbr.rel (%p716) target = $region44
    $region43: #{bottleneck_forward.3} parent=5 // pred_region
      %s719 = ssub.s32 %s10, 2
      // Predicated region
      $region45: #{bottleneck_forward.3} parent=43 // pred_check
        %p720 = pneg %p144
      $region46: #{bottleneck_forward.3} parent=43 // pred_check_branch
        %722 = sbr.rel (%p720) target = $region48
      $region47: #{bottleneck_forward.3} parent=43 // pred_region
        %s723 = smul.u32 4, %s22
        %p724 = scmp.lt.s32.totalorder %s21, 1
        %s725 = scalar_select %p724, %s21, 1
        %p726 = scmp.lt.s32.totalorder %s723, 7
        %s727 = scalar_select %p726, %s723, 7
        %s728 = smul.addr %s725, 8
        %s729 = sadd.s32 %s727, %s728
        %s730 = smul.addr %s729, 8
        %s731 = scalar_lea.vmem %s4, %s730
      $region48: #{bottleneck_forward.3} parent=43 // pred_fallthru
        _
    $region44: #{bottleneck_forward.3} parent=5 // pred_fallthru
      _
  $region6: #{bottleneck_forward.3} parent=0 // loop_footer
    %s14 = sadd.s32 1, %s10
  $region7: #{bottleneck_forward.3} parent=0 // loop_footer_branch
    %9 = sbr.rel target = $region3
  $region8: #{bottleneck_forward.3} parent=0 // loop_exit
    _

</llo_original>
